<compile_context>
chip_gen: v7x
topology: tpu7x:2x2x1
jax: 0.10.0
libtpu: 0.0.40
codegen_flags: <defaults>
</compile_context>

<pallas_src>
import functools

import jax
import jax.numpy as jnp
import numpy as np
from jax import lax
from jax.experimental import pallas as pl
from jax.experimental.pallas import tpu as pltpu

RMS_EPS = 1e-6   # config.rms_norm_eps
BIT_EPS = 1e-8   # RMSNorm eps inside BitLinear


# ---------------------------------------------------------------------------
# Runtime feature probes / hardware queries
# ---------------------------------------------------------------------------
_SINGLE_BUFFER_WEIGHTS = None
_VMEM_CAP_CACHE = None


def _probe_single_buffer():
    """Check that pipeline_mode=pl.Buffered(1) is accepted by this jax/Mosaic."""
    if not hasattr(pl, "Buffered"):
        return False
    try:
        def k(x_ref, o_ref):
            o_ref[...] = x_ref[...] + 1.0

        spec = pl.BlockSpec((8, 128), lambda i: (0, 0),
                            pipeline_mode=pl.Buffered(1))
        fn = pl.pallas_call(
            k, grid=(2,),
            in_specs=[spec],
            out_specs=pl.BlockSpec((8, 128), lambda i: (0, 0)),
            out_shape=jax.ShapeDtypeStruct((8, 128), jnp.float32))
        jax.block_until_ready(fn(jnp.zeros((8, 128), jnp.float32)))
        return True
    except Exception:
        return False


def _single_buffer_ok():
    global _SINGLE_BUFFER_WEIGHTS
    if _SINGLE_BUFFER_WEIGHTS is None:
        _SINGLE_BUFFER_WEIGHTS = _probe_single_buffer()
    return _SINGLE_BUFFER_WEIGHTS


def _vmem_capacity():
    global _VMEM_CAP_CACHE
    if _VMEM_CAP_CACHE is None:
        try:
            _VMEM_CAP_CACHE = int(pltpu.get_tpu_info().vmem_capacity_bytes)
        except Exception:
            _VMEM_CAP_CACHE = 64 << 20   # conservative (v7x) default
    return _VMEM_CAP_CACHE


# ---------------------------------------------------------------------------
# In-kernel helpers
# ---------------------------------------------------------------------------
def _act_quant(xn):
    """Per-row int8 absmax fake-quant.

    Returns (integer-valued bf16 codes in [-128,127], per-row post-scale amax/127)
    so that codes * post_scale == fake-quantized activations exactly.
    """
    amax = jnp.maximum(jnp.max(jnp.abs(xn), axis=-1, keepdims=True), 1e-5)
    q = jnp.clip(jnp.round(xn * (127.0 / amax)), -128.0, 127.0)
    return q.astype(jnp.bfloat16), amax * (1.0 / 127.0)


# ---------------------------------------------------------------------------
# Pallas kernels
# ---------------------------------------------------------------------------
def _ifg_kernel(x_ref, anw_ref, inw_ref, fnw_ref, gnw_ref,
                wi_ref, wf_ref, wg_ref, ws_ref,
                i_out, f_out, g_out):
    """attn_norm + fused i/f/g BitLinears + gating epilogue."""
    x = x_ref[...]
    # attn_norm
    h = x * lax.rsqrt(jnp.mean(x * x, axis=-1, keepdims=True) + RMS_EPS) * anw_ref[...]
    # shared BitLinear-input RMS statistic (per-projection norm weight below)
    hr = lax.rsqrt(jnp.mean(h * h, axis=-1, keepdims=True) + BIT_EPS)

    def proj(nw_ref, w_ref, ws):
        q, s = _act_quant(h * hr * nw_ref[...])
        acc = jnp.dot(q, w_ref[...].astype(jnp.bfloat16),
                      preferred_element_type=jnp.float32)
        return acc * (s * ws)

    i_raw = proj(inw_ref, wi_ref, ws_ref[0, 0])
    f_raw = proj(fnw_ref, wf_ref, ws_ref[0, 1])
    g = proj(gnw_ref, wg_ref, ws_ref[0, 2])

    # Gating epilogue: sigmoid/silu (EUP) overlap the MXU dots above so the
    # recurrence kernel becomes a pure VPU/XLU scan.
    f = jax.nn.sigmoid(f_raw)
    i_out[...] = i_raw * jax.nn.sigmoid(i_raw) * (1.0 - f)   # silu(i)*(1-f)
    f_out[...] = f
    g_out[...] = g


def _hgrn_kernel(i_ref, f_ref, o_ref, carry_ref, *, chunk):
    """Pure linear recurrence h_t = f_t*h_{t-1} + i_t over one
    (batch, T-block, D-tile) block; carry kept in VMEM scratch across T-blocks."""
    @pl.when(pl.program_id(2) == 0)
    def _():
        carry_ref[...] = jnp.zeros_like(carry_ref)

    t_blk, Dt = i_ref.shape[1], i_ref.shape[2]
    n_chunks = t_blk // chunk

    # Hoisted constants (JAX does not CSE broadcasts across fori iterations).
    row = lax.broadcasted_iota(jnp.int32, (chunk, Dt), 0)
    ones = jnp.ones((chunk, Dt), jnp.float32)
    zeros = jnp.zeros((chunk, Dt), jnp.float32)
    shifts = []
    d = 1
    while d < chunk:
        shifts.append((d, row >= d))
        d *= 2

    def body(c, carry):
        t0 = pl.multiple_of(c * chunk, chunk)
        a = f_ref[0, pl.ds(t0, chunk), :]
        b = i_ref[0, pl.ds(t0, chunk), :]
        # log-depth inclusive scan of the affine composition: h_t = A_t*carry + B_t
        for dd, keep in shifts:
            a_prev = jnp.where(keep, pltpu.roll(a, shift=dd, axis=0), ones)
            b_prev = jnp.where(keep, pltpu.roll(b, shift=dd, axis=0), zeros)
            b = a * b_prev + b
            a = a * a_prev
        h = a * carry + b                               # (chunk, Dt)
        o_ref[0, pl.ds(t0, chunk), :] = h
        return h[chunk - 1:chunk, :]                    # carry = last row

    carry_ref[...] = lax.fori_loop(0, n_chunks, body, carry_ref[...],
                                   unroll=n_chunks <= 4)


def _oproj_kernel(g_ref, o_ref, x_ref, gnorm_ref, onw_ref, wo_ref, mnw_ref, ws_ref,
                  resid_out, h2_out):
    """FusedRMSNormSwishGate + o_proj BitLinear + residual add + mlp_norm."""
    g = g_ref[...]
    o = o_ref[...]
    gn = g * lax.rsqrt(jnp.mean(g * g, axis=-1, keepdims=True) + RMS_EPS) * gnorm_ref[...]
    gated = gn * (o * jax.nn.sigmoid(o))
    xn = gated * lax.rsqrt(jnp.mean(gated * gated, axis=-1, keepdims=True) + BIT_EPS) * onw_ref[...]
    q, s = _act_quant(xn)
    attn = jnp.dot(q, wo_ref[...].astype(jnp.bfloat16),
                   preferred_element_type=jnp.float32) * (s * ws_ref[0, 0])
    r = attn + x_ref[...]
    resid_out[...] = r
    h2_out[...] = r * lax.rsqrt(jnp.mean(r * r, axis=-1, keepdims=True) + RMS_EPS) * mnw_ref[...]


def _mlp_kernel(h_ref, r_ref, gnw_ref, wg_ref, dnw_ref, wd_ref, ws_ref,
                out_ref, *, inter):
    """gate_proj BitLinear + in-kernel swiglu split + down_proj BitLinear + add."""
    h = h_ref[...]
    xn = h * lax.rsqrt(jnp.mean(h * h, axis=-1, keepdims=True) + BIT_EPS) * gnw_ref[...]
    q, s = _act_quant(xn)
    y = jnp.dot(q, wg_ref[...].astype(jnp.bfloat16),
                preferred_element_type=jnp.float32) * (s * ws_ref[0, 0])
    gate = y[:, :inter]
    val = y[:, inter:]
    sw = gate * jax.nn.sigmoid(gate) * val
    xn2 = sw * lax.rsqrt(jnp.mean(sw * sw, axis=-1, keepdims=True) + BIT_EPS) * dnw_ref[...]
    q2, s2 = _act_quant(xn2)
    z = jnp.dot(q2, wd_ref[...].astype(jnp.bfloat16),
                preferred_element_type=jnp.float32) * (s2 * ws_ref[0, 1])
    out_ref[...] = r_ref[...] + z


# ---------------------------------------------------------------------------
# Spec / tiling helpers
# ---------------------------------------------------------------------------
def _row_spec(tile_m, k):
    """Activation slab tiled along M, feature axis full (lane-dense)."""
    return pl.BlockSpec((tile_m, k), lambda m: (m, 0))


def _const_spec(shape):
    """Weight resident in VMEM across all grid steps (single-buffered if possible)."""
    idx = lambda m, _n=len(shape): (0,) * _n
    if _single_buffer_ok():
        return pl.BlockSpec(shape, idx, pipeline_mode=pl.Buffered(1))
    return pl.BlockSpec(shape, idx)


def _smem_spec():
    """Scalar weight-scale vector placed in SMEM (no padded (1,1) VMEM tile)."""
    return pl.BlockSpec(memory_space=pltpu.MemorySpace.SMEM)


def _choose_tile_m(M, row_bytes, resident_bytes):
    """Largest power-of-two M-tile (<=512) whose double-buffered activation
    slabs fit next to the resident weights in roughly half of VMEM."""
    budget = _vmem_capacity() // 2 - resident_bytes
    tile = 512
    while tile > 64 and tile * row_bytes * 2 > budget:
        tile //= 2
    return M if M <= tile else tile


def _vmem_limit(resident_bytes, tile_bytes):
    nbuf = 1 if _single_buffer_ok() else 2
    est = resident_bytes * nbuf + tile_bytes * 2 + (8 << 20)
    return int(min(max(est, 32 << 20), _vmem_capacity()))


def _cparams(sem, resident_bytes, tile_bytes):
    return pltpu.CompilerParams(
        dimension_semantics=sem,
        vmem_limit_bytes=_vmem_limit(resident_bytes, tile_bytes))


# ---------------------------------------------------------------------------
# pallas_call wrappers
# ---------------------------------------------------------------------------
def _ifg_proj(p, x2, ifg_ws):
    M, H = x2.shape
    D = p['i_w'].shape[1]
    resident = 3 * H * D + 4 * H * 4            # int8 weights + f32 norm vectors
    row_bytes = (H + 3 * D) * 4
    tile_m = _choose_tile_m(M, row_bytes, resident)
    out = jax.ShapeDtypeStruct((M, D), jnp.float32)
    return pl.pallas_call(
        _ifg_kernel,
        grid=(pl.cdiv(M, tile_m),),
        in_specs=[_row_spec(tile_m, H),
                  _const_spec((1, H)), _const_spec((1, H)),
                  _const_spec((1, H)), _const_spec((1, H)),
                  _const_spec((H, D)), _const_spec((H, D)), _const_spec((H, D)),
                  _smem_spec()],
        out_specs=(_row_spec(tile_m, D),) * 3,
        out_shape=(out, out, out),
        compiler_params=_cparams(("parallel",), resident, tile_m * row_bytes),
    )(x2, p['attn_norm_w'], p['i_nw'], p['f_nw'], p['g_nw'],
      p['i_w'], p['f_w'], p['g_w'], ifg_ws)


def _hgrn_recurrence(i3, f3):
    B, T, D = i3.shape
    if D % 128 == 0:
        d_tile = next(t for t in (512, 384, 256, 128) if D % t == 0)
    else:
        d_tile = D
    chunk = next(c for c in (8, 4, 2, 1) if T % c == 0)
    t_blk = T if T <= 256 else 256               # 256 % chunk == 0 for all chunks
    spec = pl.BlockSpec((1, t_blk, d_tile), lambda b, d, t: (b, t, d))
    return pl.pallas_call(
        functools.partial(_hgrn_kernel, chunk=chunk),
        grid=(B, pl.cdiv(D, d_tile), pl.cdiv(T, t_blk)),
        in_specs=[spec, spec],
        out_specs=spec,
        out_shape=jax.ShapeDtypeStruct((B, T, D), jnp.float32),
        scratch_shapes=[pltpu.VMEM((1, d_tile), jnp.float32)],
        compiler_params=pltpu.CompilerParams(
            dimension_semantics=("parallel", "parallel", "arbitrary"),
            vmem_limit_bytes=_vmem_limit(0, 3 * t_blk * d_tile * 4)),
    )(i3, f3)


def _oproj_fused(p, g, o2, x2, o_ws):
    M, D = g.shape
    H = x2.shape[1]
    resident = D * H + (2 * D + 2 * H) * 4
    row_bytes = (2 * D + 3 * H) * 4
    tile_m = _choose_tile_m(M, row_bytes, resident)
    out = jax.ShapeDtypeStruct((M, H), jnp.float32)
    return pl.pallas_call(
        _oproj_kernel,
        grid=(pl.cdiv(M, tile_m),),
        in_specs=[_row_spec(tile_m, D), _row_spec(tile_m, D), _row_spec(tile_m, H),
                  _const_spec((1, D)), _const_spec((1, D)),
                  _const_spec((D, H)), _const_spec((1, H)),
                  _smem_spec()],
        out_specs=(_row_spec(tile_m, H), _row_spec(tile_m, H)),
        out_shape=(out, out),
        compiler_params=_cparams(("parallel",), resident, tile_m * row_bytes),
    )(g, o2, x2, p['gnorm_w'], p['o_nw'], p['o_w'], p['mlp_norm_w'], o_ws)


def _mlp_fused(p, h2, resid, mlp_ws):
    M, H = h2.shape
    two_i = p['gate_w'].shape[1]
    inter = two_i // 2
    resident = H * two_i + inter * H + (H + inter) * 4
    row_bytes = (3 * H + 3 * inter) * 4          # in/out slabs + y/sw temporaries
    tile_m = _choose_tile_m(M, row_bytes, resident)
    return pl.pallas_call(
        functools.partial(_mlp_kernel, inter=inter),
        grid=(pl.cdiv(M, tile_m),),
        in_specs=[_row_spec(tile_m, H), _row_spec(tile_m, H),
                  _const_spec((1, H)), _const_spec((H, two_i)),
                  _const_spec((1, inter)), _const_spec((inter, H)),
                  _smem_spec()],
        out_specs=_row_spec(tile_m, H),
        out_shape=jax.ShapeDtypeStruct((M, H), jnp.float32),
        compiler_params=_cparams(("parallel",), resident, tile_m * row_bytes),
    )(h2, resid, p['gate_nw'], p['gate_w'], p['down_nw'], p['down_w'], mlp_ws)


# ---------------------------------------------------------------------------
# HGRNBitBlock forward (Pallas)
# ---------------------------------------------------------------------------
def hgrn_bit_block(params, x):
    B, T, H = x.shape
    M = B * T
    x2 = x.reshape(M, H)

    ifg_ws = jnp.concatenate(
        [params['i_ws'], params['f_ws'], params['g_ws']], axis=1)           # (1,3)
    mlp_ws = jnp.concatenate([params['gate_ws'], params['down_ws']], axis=1)  # (1,2)

    # K1: attn_norm + i/f/g BitLinears + gating epilogue
    i_g, f_g, g = _ifg_proj(params, x2, ifg_ws)
    D = i_g.shape[-1]

    # K2: pure linear recurrence (channels independent, heads flattened)
    o3 = _hgrn_recurrence(i_g.reshape(B, T, D), f_g.reshape(B, T, D))
    o2 = o3.reshape(M, D)

    # K3: g_norm swish-gate + o_proj + residual + mlp_norm
    new_resid, h2 = _oproj_fused(params, g, o2, x2, params['o_ws'])

    # K4: gate_proj + swiglu + down_proj + residual
    out2 = _mlp_fused(params, h2, new_resid, mlp_ws)
    return out2.reshape(B, T, H)


# ---------------------------------------------------------------------------
# Pure-JAX reference (full-precision fake-quant path) for validation
# ---------------------------------------------------------------------------
def reference_forward(params, x):
    B, T, H = x.shape
    x2 = x.reshape(B * T, H)

    def rms(v, w, eps):
        return v * lax.rsqrt(jnp.mean(v * v, -1, keepdims=True) + eps) * w

    def bl(v, name):
        nw = params[f'{name}_nw']
        wq = params[f'{name}_w'].astype(jnp.float32) * params[f'{name}_ws']
        vn = rms(v, nw, BIT_EPS)
        scale = 127.0 / jnp.maximum(jnp.max(jnp.abs(vn), -1, keepdims=True), 1e-5)
        vq = jnp.clip(jnp.round(vn * scale), -128.0, 127.0) / scale
        return vq @ wq

    residual = x2
    h = rms(x2, params['attn_norm_w'], RMS_EPS)
    i_raw = bl(h, 'i')
    f_raw = bl(h, 'f')
    g = bl(h, 'g')
    f = jax.nn.sigmoid(f_raw)
    i = i_raw * jax.nn.sigmoid(i_raw) * (1.0 - f)
    D = i.shape[-1]
    i3 = jnp.swapaxes(i.reshape(B, T, D), 0, 1)   # (T, B, D)
    f3 = jnp.swapaxes(f.reshape(B, T, D), 0, 1)

    def step(hcar, tf_ti):
        tf, ti = tf_ti
        hcar = tf * hcar + ti
        return hcar, hcar

    _, o3 = jax.lax.scan(step, jnp.zeros((B, D), jnp.float32), (f3, i3))
    o2 = jnp.swapaxes(o3, 0, 1).reshape(B * T, D)
    gn = rms(g, params['gnorm_w'], RMS_EPS) * (o2 * jax.nn.sigmoid(o2))
    attn_out = bl(gn, 'o')
    new_resid = attn_out + residual
    h2 = rms(new_resid, params['mlp_norm_w'], RMS_EPS)
    y = bl(h2, 'gate')
    I = y.shape[-1] // 2
    gate, y2 = y[:, :I], y[:, I:]
    sw = gate * jax.nn.sigmoid(gate) * y2
    z = bl(sw, 'down')
    return (new_resid + z).reshape(B, T, H)


# ---------------------------------------------------------------------------
# Deterministic parameter setup + run
# ---------------------------------------------------------------------------
def quantize_weight(w):
    """Ternary (BitNet 1.58b) fake-quant, decomposed into exact {-1,0,1} int8
    codes plus an f32 scalar post-scale (codes * scale == quantized weight)."""
    scale = 1.0 / jnp.maximum(jnp.mean(jnp.abs(w)), 1e-5)
    w_int = jnp.clip(jnp.round(w * scale), -1.0, 1.0)
    return w_int.astype(jnp.int8), jnp.full((1, 1), 1.0 / scale, jnp.float32)


if __name__ == "__main__":
    key = jax.random.PRNGKey(0)
    B, T, H = 2, 8, 32
    expand_ratio = 1
    D = int(H * expand_ratio)                                    # input_dim = 32
    hidden_ratio = 4
    I = 256 * ((int(H * hidden_ratio * 2 / 3) + 255) // 256)     # intermediate = 256
    gain = 2.0 ** (-2.5)

    keys = jax.random.split(key, 8)

    def xavier(k, fin, fout):
        bound = gain * (6.0 / (fin + fout)) ** 0.5
        return jax.random.uniform(k, (fin, fout), jnp.float32, -bound, bound)

    ones2 = lambda n: jnp.ones((1, n), jnp.float32)
    params = {
        'attn_norm_w': ones2(H),
        'mlp_norm_w': ones2(H),
        'gnorm_w': ones2(D),
    }
    for name, k, fin, fout in [('i', keys[0], H, D), ('f', keys[1], H, D),
                               ('g', keys[2], H, D), ('o', keys[3], D, H),
                               ('gate', keys[4], H, 2 * I), ('down', keys[5], I, H)]:
        w_int, ws = quantize_weight(xavier(k, fin, fout))
        params[f'{name}_w'] = w_int
        params[f'{name}_ws'] = ws
        params[f'{name}_nw'] = ones2(fin)

    x = jax.random.normal(keys[6], (B, T, H), jnp.float32)

    _single_buffer_ok()   # run the Buffered(1) probe eagerly, outside jit tracing

    fwd = jax.jit(hgrn_bit_block)
    out = jax.block_until_ready(fwd(params, x))
    ref = reference_forward(params, x)

    assert out.shape == (B, T, H)
    np.testing.assert_allclose(np.asarray(out), np.asarray(ref), rtol=2e-3, atol=2e-3)
    print("KERNEL_OK")
</pallas_src>

<mosaic_0001>
module attributes {stable_mosaic.version = 11 : i64} {
  func.func @k(%arg0: i32, %arg1: memref<8x128xf32, #tpu.memory_space<vmem>>, %arg2: memref<8x128xf32, #tpu.memory_space<vmem>>) attributes {dimension_semantics = [#tpu.dimension_semantics<arbitrary>], iteration_bounds = array<i64: 2>, scalar_prefetch = 0 : i64, scratch_operands = 0 : i64, tpu.core_type = #tpu.core_type<tc>, window_params = [{pipeline_mode = #tpu.pipeline_mode<synchronous>, transform_indices = @transform_0, window_bounds = array<i64: 8, 128>}, {pipeline_mode = #tpu.pipeline_mode<synchronous>, transform_indices = @transform_1, window_bounds = array<i64: 8, 128>}]} {
    %c0 = arith.constant 0 : index
    %c0_0 = arith.constant 0 : index
    %0 = vector.load %arg1[%c0, %c0_0] : memref<8x128xf32, #tpu.memory_space<vmem>>, vector<8x128xf32>
    %cst = arith.constant 1.000000e+00 : f32
    %1 = vector.broadcast %cst : f32 to vector<8x128xf32>
    %2 = arith.addf %0, %1 : vector<8x128xf32>
    %c0_1 = arith.constant 0 : index
    %c0_2 = arith.constant 0 : index
    %3 = vector.load %arg2[%c0_1, %c0_2] : memref<8x128xf32, #tpu.memory_space<vmem>>, vector<8x128xf32>
    tpu.vector_store %arg2[%c0_1, %c0_2], %2 {strides = array<i32>} : memref<8x128xf32, #tpu.memory_space<vmem>>, vector<8x128xf32>,
    return
  }
  func.func @transform_0(%arg0: i32) -> (i32, i32) {
    %c0_i32 = arith.constant 0 : i32
    %c0_i32_0 = arith.constant 0 : i32
    %c0_i32_1 = arith.constant 0 : i32
    return %c0_i32, %c0_i32_0 : i32, i32
  }
  func.func @transform_1(%arg0: i32) -> (i32, i32) {
    %c0_i32 = arith.constant 0 : i32
    %c0_i32_0 = arith.constant 0 : i32
    %c0_i32_1 = arith.constant 0 : i32
    return %c0_i32, %c0_i32_0 : i32, i32
  }
}

module attributes {stable_mosaic.version = 11 : i64} {
  func.func @_hgrn_kernel(%arg0: i32, %arg1: i32, %arg2: i32, %arg3: memref<1x8x32xf32, #tpu.memory_space<vmem>>, %arg4: memref<1x8x32xf32, #tpu.memory_space<vmem>>, %arg5: memref<1x8x32xf32, #tpu.memory_space<vmem>>, %arg6: memref<1x32xf32, #tpu.memory_space<vmem>>) attributes {dimension_semantics = [#tpu.dimension_semantics<parallel>, #tpu.dimension_semantics<parallel>, #tpu.dimension_semantics<arbitrary>], iteration_bounds = array<i64: 2, 1, 1>, scalar_prefetch = 0 : i64, scratch_operands = 1 : i64, tpu.core_type = #tpu.core_type<tc>, window_params = [{transform_indices = @transform_0, window_bounds = array<i64: 1, 8, 32>}, {transform_indices = @transform_1, window_bounds = array<i64: 1, 8, 32>}, {transform_indices = @transform_2, window_bounds = array<i64: 1, 8, 32>}]} {
    %c0_i32 = arith.constant 0 : i32
    %0 = arith.cmpi eq, %arg2, %c0_i32 : i32
    %1 = arith.extui %0 : i1 to i32
    %c0_i32_0 = arith.constant 0 : i32
    %2 = arith.cmpi ne, %1, %c0_i32_0 : i32
    scf.if %2 {
      %cst_19 = arith.constant 0.000000e+00 : f32
      %51 = vector.broadcast %cst_19 : f32 to vector<1x32xf32>
      %c0_20 = arith.constant 0 : index
      %c0_21 = arith.constant 0 : index
      %52 = vector.load %arg6[%c0_20, %c0_21] : memref<1x32xf32, #tpu.memory_space<vmem>>, vector<1x32xf32>
      tpu.vector_store %arg6[%c0_20, %c0_21], %51 {strides = array<i32>} : memref<1x32xf32, #tpu.memory_space<vmem>>, vector<1x32xf32>,
    } else {
    }
    %3 = tpu.iota {dimensions = array<i32: 0>} : vector<8x32xi32>
    %cst = arith.constant 1.000000e+00 : f32
    %4 = vector.broadcast %cst : f32 to vector<8x32xf32>
    %cst_1 = arith.constant 0.000000e+00 : f32
    %5 = vector.broadcast %cst_1 : f32 to vector<8x32xf32>
    %c1_i32 = arith.constant 1 : i32
    %6 = vector.broadcast %c1_i32 : i32 to vector<8x32xi32>
    %7 = arith.cmpi sge, %3, %6 : vector<8x32xi32>
    %c2_i32 = arith.constant 2 : i32
    %8 = vector.broadcast %c2_i32 : i32 to vector<8x32xi32>
    %9 = arith.cmpi sge, %3, %8 : vector<8x32xi32>
    %c4_i32 = arith.constant 4 : i32
    %10 = vector.broadcast %c4_i32 : i32 to vector<8x32xi32>
    %11 = arith.cmpi sge, %3, %10 : vector<8x32xi32>
    %c0 = arith.constant 0 : index
    %c0_2 = arith.constant 0 : index
    %12 = vector.load %arg6[%c0, %c0_2] : memref<1x32xf32, #tpu.memory_space<vmem>>, vector<1x32xf32>
    %c0_i32_3 = arith.constant 0 : i32
    %c8_i32 = arith.constant 8 : i32
    %13 = arith.muli %c0_i32_3, %c8_i32 : i32
    %14 = tpu.assume_multiple %13, 8 : i32
    %c0_4 = arith.constant 0 : index
    %15 = arith.index_cast %14 : i32 to index
    %c0_5 = arith.constant 0 : index
    %16 = vector.load %arg4[%c0_4, %15, %c0_5] : memref<1x8x32xf32, #tpu.memory_space<vmem>>, vector<1x8x32xf32>
    %17 = vector.shape_cast %16 : vector<1x8x32xf32> to vector<8x32xf32>
    %c0_6 = arith.constant 0 : index
    %18 = arith.index_cast %14 : i32 to index
    %c0_7 = arith.constant 0 : index
    %19 = vector.load %arg3[%c0_6, %18, %c0_7] : memref<1x8x32xf32, #tpu.memory_space<vmem>>, vector<1x8x32xf32>
    %20 = vector.shape_cast %19 : vector<1x8x32xf32> to vector<8x32xf32>
    %c1_i32_8 = arith.constant 1 : i32
    %21 = tpu.dynamic_rotate %17 by %c1_i32_8 dim 0 : vector<8x32xf32>, i32 -> vector<8x32xf32>
    %22 = arith.select %7, %21, %4 : vector<8x32xi1>, vector<8x32xf32>
    %c1_i32_9 = arith.constant 1 : i32
    %23 = tpu.dynamic_rotate %20 by %c1_i32_9 dim 0 : vector<8x32xf32>, i32 -> vector<8x32xf32>
    %24 = arith.select %7, %23, %5 : vector<8x32xi1>, vector<8x32xf32>
    %25 = arith.mulf %17, %24 : vector<8x32xf32>
    %26 = arith.addf %25, %20 : vector<8x32xf32>
    %27 = arith.mulf %17, %22 : vector<8x32xf32>
    %c2_i32_10 = arith.constant 2 : i32
    %28 = tpu.dynamic_rotate %27 by %c2_i32_10 dim 0 : vector<8x32xf32>, i32 -> vector<8x32xf32>
    %29 = arith.select %9, %28, %4 : vector<8x32xi1>, vector<8x32xf32>
    %c2_i32_11 = arith.constant 2 : i32
    %30 = tpu.dynamic_rotate %26 by %c2_i32_11 dim 0 : vector<8x32xf32>, i32 -> vector<8x32xf32>
    %31 = arith.select %9, %30, %5 : vector<8x32xi1>, vector<8x32xf32>
    %32 = arith.mulf %27, %31 : vector<8x32xf32>
    %33 = arith.addf %32, %26 : vector<8x32xf32>
    %34 = arith.mulf %27, %29 : vector<8x32xf32>
    %c4_i32_12 = arith.constant 4 : i32
    %35 = tpu.dynamic_rotate %34 by %c4_i32_12 dim 0 : vector<8x32xf32>, i32 -> vector<8x32xf32>
    %36 = arith.select %11, %35, %4 : vector<8x32xi1>, vector<8x32xf32>
    %c4_i32_13 = arith.constant 4 : i32
    %37 = tpu.dynamic_rotate %33 by %c4_i32_13 dim 0 : vector<8x32xf32>, i32 -> vector<8x32xf32>
    %38 = arith.select %11, %37, %5 : vector<8x32xi1>, vector<8x32xf32>
    %39 = arith.mulf %34, %38 : vector<8x32xf32>
    %40 = arith.addf %39, %33 : vector<8x32xf32>
    %41 = arith.mulf %34, %36 : vector<8x32xf32>
    %42 = vector.broadcast %12 : vector<1x32xf32> to vector<8x32xf32>
    %43 = arith.mulf %41, %42 : vector<8x32xf32>
    %44 = arith.addf %43, %40 : vector<8x32xf32>
    %c0_14 = arith.constant 0 : index
    %45 = arith.index_cast %14 : i32 to index
    %c0_15 = arith.constant 0 : index
    %46 = vector.load %arg5[%c0_14, %45, %c0_15] : memref<1x8x32xf32, #tpu.memory_space<vmem>>, vector<1x8x32xf32>
    %47 = vector.shape_cast %46 : vector<1x8x32xf32> to vector<8x32xf32>
    %48 = vector.shape_cast %44 : vector<8x32xf32> to vector<1x8x32xf32>
    tpu.vector_store %arg5[%c0_14, %45, %c0_15], %48 {strides = array<i32>} : memref<1x8x32xf32, #tpu.memory_space<vmem>>, vector<1x8x32xf32>,
    %49 = vector.extract_strided_slice %44 {offsets = [7, 0], sizes = [1, 32], strides = [1, 1]} : vector<8x32xf32> to vector<1x32xf32>
    %c1_i32_16 = arith.constant 1 : i32
    %c0_17 = arith.constant 0 : index
    %c0_18 = arith.constant 0 : index
    %50 = vector.load %arg6[%c0_17, %c0_18] : memref<1x32xf32, #tpu.memory_space<vmem>>, vector<1x32xf32>
    tpu.vector_store %arg6[%c0_17, %c0_18], %49 {strides = array<i32>} : memref<1x32xf32, #tpu.memory_space<vmem>>, vector<1x32xf32>,
    return
  }
  func.func @transform_0(%arg0: i32, %arg1: i32, %arg2: i32) -> (i32, i32, i32) {
    %c0_i32 = arith.constant 0 : i32
    return %arg0, %arg2, %arg1 : i32, i32, i32
  }
  func.func @transform_1(%arg0: i32, %arg1: i32, %arg2: i32) -> (i32, i32, i32) {
    %c0_i32 = arith.constant 0 : i32
    return %arg0, %arg2, %arg1 : i32, i32, i32
  }
  func.func @transform_2(%arg0: i32, %arg1: i32, %arg2: i32) -> (i32, i32, i32) {
    %c0_i32 = arith.constant 0 : i32
    return %arg0, %arg2, %arg1 : i32, i32, i32
  }
}

module attributes {stable_mosaic.version = 11 : i64} {
  func.func @_ifg_kernel(%arg0: i32, %arg1: memref<16x32xf32, #tpu.memory_space<vmem>>, %arg2: memref<1x32xf32, #tpu.memory_space<vmem>>, %arg3: memref<1x32xf32, #tpu.memory_space<vmem>>, %arg4: memref<1x32xf32, #tpu.memory_space<vmem>>, %arg5: memref<1x32xf32, #tpu.memory_space<vmem>>, %arg6: memref<32x32xi8, #tpu.memory_space<vmem>>, %arg7: memref<32x32xi8, #tpu.memory_space<vmem>>, %arg8: memref<32x32xi8, #tpu.memory_space<vmem>>, %arg9: memref<1x3xf32, #tpu.memory_space<smem>>, %arg10: memref<16x32xf32, #tpu.memory_space<vmem>>, %arg11: memref<16x32xf32, #tpu.memory_space<vmem>>, %arg12: memref<16x32xf32, #tpu.memory_space<vmem>>) attributes {dimension_semantics = [#tpu.dimension_semantics<parallel>], iteration_bounds = array<i64: 1>, scalar_prefetch = 0 : i64, scratch_operands = 0 : i64, tpu.core_type = #tpu.core_type<tc>, window_params = [{transform_indices = @transform_0, window_bounds = array<i64: 16, 32>}, {pipeline_mode = #tpu.pipeline_mode<synchronous>, transform_indices = @transform_1, window_bounds = array<i64: 1, 32>}, {pipeline_mode = #tpu.pipeline_mode<synchronous>, transform_indices = @transform_2, window_bounds = array<i64: 1, 32>}, {pipeline_mode = #tpu.pipeline_mode<synchronous>, transform_indices = @transform_3, window_bounds = array<i64: 1, 32>}, {pipeline_mode = #tpu.pipeline_mode<synchronous>, transform_indices = @transform_4, window_bounds = array<i64: 1, 32>}, {pipeline_mode = #tpu.pipeline_mode<synchronous>, transform_indices = @transform_5, window_bounds = array<i64: 32, 32>}, {pipeline_mode = #tpu.pipeline_mode<synchronous>, transform_indices = @transform_6, window_bounds = array<i64: 32, 32>}, {pipeline_mode = #tpu.pipeline_mode<synchronous>, transform_indices = @transform_7, window_bounds = array<i64: 32, 32>}, {transform_indices = @transform_8, window_bounds = array<i64: 1, 3>}, {transform_indices = @transform_9, window_bounds = array<i64: 16, 32>}, {transform_indices = @transform_10, window_bounds = array<i64: 16, 32>}, {transform_indices = @transform_11, window_bounds = array<i64: 16, 32>}]} {
    %c0 = arith.constant 0 : index
    %c0_0 = arith.constant 0 : index
    %0 = vector.load %arg1[%c0, %c0_0] : memref<16x32xf32, #tpu.memory_space<vmem>>, vector<16x32xf32>
    %1 = arith.mulf %0, %0 : vector<16x32xf32>
    %cst = arith.constant dense<0.000000e+00> : vector<16xf32>
    %2 = vector.multi_reduction <add>, %1, %cst [1] : vector<16x32xf32> to vector<16xf32>
    %3 = vector.shape_cast %2 : vector<16xf32> to vector<16x1xf32>
    %cst_1 = arith.constant 3.200000e+01 : f32
    %4 = vector.broadcast %cst_1 : f32 to vector<16x1xf32>
    %5 = arith.divf %3, %4 : vector<16x1xf32>
    %cst_2 = arith.constant 9.99999997E-7 : f32
    %6 = vector.broadcast %cst_2 : f32 to vector<16x1xf32>
    %7 = arith.addf %5, %6 : vector<16x1xf32>
    %8 = math.rsqrt %7 : vector<16x1xf32>
    %9 = vector.broadcast %8 : vector<16x1xf32> to vector<16x32xf32>
    %10 = arith.mulf %0, %9 : vector<16x32xf32>
    %c0_3 = arith.constant 0 : index
    %c0_4 = arith.constant 0 : index
    %11 = vector.load %arg2[%c0_3, %c0_4] : memref<1x32xf32, #tpu.memory_space<vmem>>, vector<1x32xf32>
    %12 = vector.broadcast %11 : vector<1x32xf32> to vector<16x32xf32>
    %13 = arith.mulf %10, %12 : vector<16x32xf32>
    %14 = arith.mulf %13, %13 : vector<16x32xf32>
    %cst_5 = arith.constant dense<0.000000e+00> : vector<16xf32>
    %15 = vector.multi_reduction <add>, %14, %cst_5 [1] : vector<16x32xf32> to vector<16xf32>
    %16 = vector.shape_cast %15 : vector<16xf32> to vector<16x1xf32>
    %cst_6 = arith.constant 3.200000e+01 : f32
    %17 = vector.broadcast %cst_6 : f32 to vector<16x1xf32>
    %18 = arith.divf %16, %17 : vector<16x1xf32>
    %cst_7 = arith.constant 9.99999993E-9 : f32
    %19 = vector.broadcast %cst_7 : f32 to vector<16x1xf32>
    %20 = arith.addf %18, %19 : vector<16x1xf32>
    %21 = math.rsqrt %20 : vector<16x1xf32>
    %c0_8 = arith.constant 0 : index
    %c0_9 = arith.constant 0 : index
    %22 = memref.load %arg9[%c0_8, %c0_9] : memref<1x3xf32, #tpu.memory_space<smem>>
    %23 = vector.broadcast %21 : vector<16x1xf32> to vector<16x32xf32>
    %24 = arith.mulf %13, %23 : vector<16x32xf32>
    %c0_10 = arith.constant 0 : index
    %c0_11 = arith.constant 0 : index
    %25 = vector.load %arg3[%c0_10, %c0_11] : memref<1x32xf32, #tpu.memory_space<vmem>>, vector<1x32xf32>
    %26 = vector.broadcast %25 : vector<1x32xf32> to vector<16x32xf32>
    %27 = arith.mulf %24, %26 : vector<16x32xf32>
    %28 = math.absf %27 : vector<16x32xf32>
    %cst_12 = arith.constant dense<0xFF800000> : vector<16xf32>
    %29 = vector.multi_reduction <maximumf>, %28, %cst_12 [1] : vector<16x32xf32> to vector<16xf32>
    %30 = vector.shape_cast %29 : vector<16xf32> to vector<16x1xf32>
    %cst_13 = arith.constant 9.99999974E-6 : f32
    %31 = vector.broadcast %cst_13 : f32 to vector<16x1xf32>
    %32 = arith.maximumf %30, %31 : vector<16x1xf32>
    %cst_14 = arith.constant 1.270000e+02 : f32
    %33 = vector.broadcast %cst_14 : f32 to vector<16x1xf32>
    %34 = arith.divf %33, %32 : vector<16x1xf32>
    %35 = vector.broadcast %34 : vector<16x1xf32> to vector<16x32xf32>
    %36 = arith.mulf %27, %35 : vector<16x32xf32>
    %37 = math.roundeven %36 : vector<16x32xf32>
    %cst_15 = arith.constant -1.280000e+02 : f32
    %cst_16 = arith.constant 1.270000e+02 : f32
    %38 = vector.broadcast %cst_15 : f32 to vector<16x32xf32>
    %39 = arith.maximumf %38, %37 : vector<16x32xf32>
    %40 = vector.broadcast %cst_16 : f32 to vector<16x32xf32>
    %41 = arith.minimumf %40, %39 : vector<16x32xf32>
    %42 = arith.truncf %41 : vector<16x32xf32> to vector<16x32xbf16>
    %cst_17 = arith.constant 0.00787401571 : f32
    %43 = vector.broadcast %cst_17 : f32 to vector<16x1xf32>
    %44 = arith.mulf %32, %43 : vector<16x1xf32>
    %c0_18 = arith.constant 0 : index
    %c0_19 = arith.constant 0 : index
    %45 = vector.load %arg6[%c0_18, %c0_19] : memref<32x32xi8, #tpu.memory_space<vmem>>, vector<32x32xi8>
    %46 = arith.sitofp %45 : vector<32x32xi8> to vector<32x32xbf16>
    %cst_20 = arith.constant dense<0.000000e+00> : vector<16x32xf32>
    %47 = tpu.matmul %42, %46, %cst_20 {dimension_numbers = #tpu.dot_dimension_numbers<[1], [0], [0], [1], [0, 0, 1, 1], [], []>} : vector<16x32xbf16>, vector<32x32xbf16>, vector<16x32xf32> -> vector<16x32xf32>
    %48 = vector.broadcast %22 : f32 to vector<16x1xf32>
    %49 = arith.mulf %44, %48 : vector<16x1xf32>
    %50 = vector.broadcast %49 : vector<16x1xf32> to vector<16x32xf32>
    %51 = arith.mulf %47, %50 : vector<16x32xf32>
    %c0_21 = arith.constant 0 : index
    %c1 = arith.constant 1 : index
    %52 = memref.load %arg9[%c0_21, %c1] : memref<1x3xf32, #tpu.memory_space<smem>>
    %53 = vector.broadcast %21 : vector<16x1xf32> to vector<16x32xf32>
    %54 = arith.mulf %13, %53 : vector<16x32xf32>
    %c0_22 = arith.constant 0 : index
    %c0_23 = arith.constant 0 : index
    %55 = vector.load %arg4[%c0_22, %c0_23] : memref<1x32xf32, #tpu.memory_space<vmem>>, vector<1x32xf32>
    %56 = vector.broadcast %55 : vector<1x32xf32> to vector<16x32xf32>
    %57 = arith.mulf %54, %56 : vector<16x32xf32>
    %58 = math.absf %57 : vector<16x32xf32>
    %cst_24 = arith.constant dense<0xFF800000> : vector<16xf32>
    %59 = vector.multi_reduction <maximumf>, %58, %cst_24 [1] : vector<16x32xf32> to vector<16xf32>
    %60 = vector.shape_cast %59 : vector<16xf32> to vector<16x1xf32>
    %cst_25 = arith.constant 9.99999974E-6 : f32
    %61 = vector.broadcast %cst_25 : f32 to vector<16x1xf32>
    %62 = arith.maximumf %60, %61 : vector<16x1xf32>
    %cst_26 = arith.constant 1.270000e+02 : f32
    %63 = vector.broadcast %cst_26 : f32 to vector<16x1xf32>
    %64 = arith.divf %63, %62 : vector<16x1xf32>
    %65 = vector.broadcast %64 : vector<16x1xf32> to vector<16x32xf32>
    %66 = arith.mulf %57, %65 : vector<16x32xf32>
    %67 = math.roundeven %66 : vector<16x32xf32>
    %cst_27 = arith.constant -1.280000e+02 : f32
    %cst_28 = arith.constant 1.270000e+02 : f32
    %68 = vector.broadcast %cst_27 : f32 to vector<16x32xf32>
    %69 = arith.maximumf %68, %67 : vector<16x32xf32>
    %70 = vector.broadcast %cst_28 : f32 to vector<16x32xf32>
    %71 = arith.minimumf %70, %69 : vector<16x32xf32>
    %72 = arith.truncf %71 : vector<16x32xf32> to vector<16x32xbf16>
    %cst_29 = arith.constant 0.00787401571 : f32
    %73 = vector.broadcast %cst_29 : f32 to vector<16x1xf32>
    %74 = arith.mulf %62, %73 : vector<16x1xf32>
    %c0_30 = arith.constant 0 : index
    %c0_31 = arith.constant 0 : index
    %75 = vector.load %arg7[%c0_30, %c0_31] : memref<32x32xi8, #tpu.memory_space<vmem>>, vector<32x32xi8>
    %76 = arith.sitofp %75 : vector<32x32xi8> to vector<32x32xbf16>
    %cst_32 = arith.constant dense<0.000000e+00> : vector<16x32xf32>
    %77 = tpu.matmul %72, %76, %cst_32 {dimension_numbers = #tpu.dot_dimension_numbers<[1], [0], [0], [1], [0, 0, 1, 1], [], []>} : vector<16x32xbf16>, vector<32x32xbf16>, vector<16x32xf32> -> vector<16x32xf32>
    %78 = vector.broadcast %52 : f32 to vector<16x1xf32>
    %79 = arith.mulf %74, %78 : vector<16x1xf32>
    %80 = vector.broadcast %79 : vector<16x1xf32> to vector<16x32xf32>
    %81 = arith.mulf %77, %80 : vector<16x32xf32>
    %c0_33 = arith.constant 0 : index
    %c2 = arith.constant 2 : index
    %82 = memref.load %arg9[%c0_33, %c2] : memref<1x3xf32, #tpu.memory_space<smem>>
    %83 = vector.broadcast %21 : vector<16x1xf32> to vector<16x32xf32>
    %84 = arith.mulf %13, %83 : vector<16x32xf32>
    %c0_34 = arith.constant 0 : index
    %c0_35 = arith.constant 0 : index
    %85 = vector.load %arg5[%c0_34, %c0_35] : memref<1x32xf32, #tpu.memory_space<vmem>>, vector<1x32xf32>
    %86 = vector.broadcast %85 : vector<1x32xf32> to vector<16x32xf32>
    %87 = arith.mulf %84, %86 : vector<16x32xf32>
    %88 = math.absf %87 : vector<16x32xf32>
    %cst_36 = arith.constant dense<0xFF800000> : vector<16xf32>
    %89 = vector.multi_reduction <maximumf>, %88, %cst_36 [1] : vector<16x32xf32> to vector<16xf32>
    %90 = vector.shape_cast %89 : vector<16xf32> to vector<16x1xf32>
    %cst_37 = arith.constant 9.99999974E-6 : f32
    %91 = vector.broadcast %cst_37 : f32 to vector<16x1xf32>
    %92 = arith.maximumf %90, %91 : vector<16x1xf32>
    %cst_38 = arith.constant 1.270000e+02 : f32
    %93 = vector.broadcast %cst_38 : f32 to vector<16x1xf32>
    %94 = arith.divf %93, %92 : vector<16x1xf32>
    %95 = vector.broadcast %94 : vector<16x1xf32> to vector<16x32xf32>
    %96 = arith.mulf %87, %95 : vector<16x32xf32>
    %97 = math.roundeven %96 : vector<16x32xf32>
    %cst_39 = arith.constant -1.280000e+02 : f32
    %cst_40 = arith.constant 1.270000e+02 : f32
    %98 = vector.broadcast %cst_39 : f32 to vector<16x32xf32>
    %99 = arith.maximumf %98, %97 : vector<16x32xf32>
    %100 = vector.broadcast %cst_40 : f32 to vector<16x32xf32>
    %101 = arith.minimumf %100, %99 : vector<16x32xf32>
    %102 = arith.truncf %101 : vector<16x32xf32> to vector<16x32xbf16>
    %cst_41 = arith.constant 0.00787401571 : f32
    %103 = vector.broadcast %cst_41 : f32 to vector<16x1xf32>
    %104 = arith.mulf %92, %103 : vector<16x1xf32>
    %c0_42 = arith.constant 0 : index
    %c0_43 = arith.constant 0 : index
    %105 = vector.load %arg8[%c0_42, %c0_43] : memref<32x32xi8, #tpu.memory_space<vmem>>, vector<32x32xi8>
    %106 = arith.sitofp %105 : vector<32x32xi8> to vector<32x32xbf16>
    %cst_44 = arith.constant dense<0.000000e+00> : vector<16x32xf32>
    %107 = tpu.matmul %102, %106, %cst_44 {dimension_numbers = #tpu.dot_dimension_numbers<[1], [0], [0], [1], [0, 0, 1, 1], [], []>} : vector<16x32xbf16>, vector<32x32xbf16>, vector<16x32xf32> -> vector<16x32xf32>
    %108 = vector.broadcast %82 : f32 to vector<16x1xf32>
    %109 = arith.mulf %104, %108 : vector<16x1xf32>
    %110 = vector.broadcast %109 : vector<16x1xf32> to vector<16x32xf32>
    %111 = arith.mulf %107, %110 : vector<16x32xf32>
    %112 = arith.negf %81 : vector<16x32xf32>
    %113 = math.exp %112 : vector<16x32xf32>
    %cst_45 = arith.constant 1.000000e+00 : f32
    %114 = vector.broadcast %cst_45 : f32 to vector<16x32xf32>
    %115 = arith.addf %114, %113 : vector<16x32xf32>
    %116 = arith.divf %114, %115 : vector<16x32xf32>
    %117 = arith.negf %51 : vector<16x32xf32>
    %118 = math.exp %117 : vector<16x32xf32>
    %cst_46 = arith.constant 1.000000e+00 : f32
    %119 = vector.broadcast %cst_46 : f32 to vector<16x32xf32>
    %120 = arith.addf %119, %118 : vector<16x32xf32>
    %121 = arith.divf %119, %120 : vector<16x32xf32>
    %122 = arith.mulf %51, %121 : vector<16x32xf32>
    %cst_47 = arith.constant 1.000000e+00 : f32
    %123 = vector.broadcast %cst_47 : f32 to vector<16x32xf32>
    %124 = arith.subf %123, %116 : vector<16x32xf32>
    %125 = arith.mulf %122, %124 : vector<16x32xf32>
    %c0_48 = arith.constant 0 : index
    %c0_49 = arith.constant 0 : index
    %126 = vector.load %arg10[%c0_48, %c0_49] : memref<16x32xf32, #tpu.memory_space<vmem>>, vector<16x32xf32>
    tpu.vector_store %arg10[%c0_48, %c0_49], %125 {strides = array<i32>} : memref<16x32xf32, #tpu.memory_space<vmem>>, vector<16x32xf32>,
    %c0_50 = arith.constant 0 : index
    %c0_51 = arith.constant 0 : index
    %127 = vector.load %arg11[%c0_50, %c0_51] : memref<16x32xf32, #tpu.memory_space<vmem>>, vector<16x32xf32>
    tpu.vector_store %arg11[%c0_50, %c0_51], %116 {strides = array<i32>} : memref<16x32xf32, #tpu.memory_space<vmem>>, vector<16x32xf32>,
    %c0_52 = arith.constant 0 : index
    %c0_53 = arith.constant 0 : index
    %128 = vector.load %arg12[%c0_52, %c0_53] : memref<16x32xf32, #tpu.memory_space<vmem>>, vector<16x32xf32>
    tpu.vector_store %arg12[%c0_52, %c0_53], %111 {strides = array<i32>} : memref<16x32xf32, #tpu.memory_space<vmem>>, vector<16x32xf32>,
    return
  }
  func.func @transform_0(%arg0: i32) -> (i32, i32) {
    %c0_i32 = arith.constant 0 : i32
    %c0_i32_0 = arith.constant 0 : i32
    return %arg0, %c0_i32 : i32, i32
  }
  func.func @transform_1(%arg0: i32) -> (i32, i32) {
    %c0_i32 = arith.constant 0 : i32
    %c0_i32_0 = arith.constant 0 : i32
    %c0_i32_1 = arith.constant 0 : i32
    return %c0_i32, %c0_i32_0 : i32, i32
  }
  func.func @transform_2(%arg0: i32) -> (i32, i32) {
    %c0_i32 = arith.constant 0 : i32
    %c0_i32_0 = arith.constant 0 : i32
    %c0_i32_1 = arith.constant 0 : i32
    return %c0_i32, %c0_i32_0 : i32, i32
  }
  func.func @transform_3(%arg0: i32) -> (i32, i32) {
    %c0_i32 = arith.constant 0 : i32
    %c0_i32_0 = arith.constant 0 : i32
    %c0_i32_1 = arith.constant 0 : i32
    return %c0_i32, %c0_i32_0 : i32, i32
  }
  func.func @transform_4(%arg0: i32) -> (i32, i32) {
    %c0_i32 = arith.constant 0 : i32
    %c0_i32_0 = arith.constant 0 : i32
    %c0_i32_1 = arith.constant 0 : i32
    return %c0_i32, %c0_i32_0 : i32, i32
  }
  func.func @transform_5(%arg0: i32) -> (i32, i32) {
    %c0_i32 = arith.constant 0 : i32
    %c0_i32_0 = arith.constant 0 : i32
    %c0_i32_1 = arith.constant 0 : i32
    return %c0_i32, %c0_i32_0 : i32, i32
  }
  func.func @transform_6(%arg0: i32) -> (i32, i32) {
    %c0_i32 = arith.constant 0 : i32
    %c0_i32_0 = arith.constant 0 : i32
    %c0_i32_1 = arith.constant 0 : i32
    return %c0_i32, %c0_i32_0 : i32, i32
  }
  func.func @transform_7(%arg0: i32) -> (i32, i32) {
    %c0_i32 = arith.constant 0 : i32
    %c0_i32_0 = arith.constant 0 : i32
    %c0_i32_1 = arith.constant 0 : i32
    return %c0_i32, %c0_i32_0 : i32, i32
  }
  func.func @transform_8(%arg0: i32) -> (i32, i32) {
    %c0_i32 = arith.constant 0 : i32
    %c0_i32_0 = arith.constant 0 : i32
    %c0_i32_1 = arith.constant 0 : i32
    return %c0_i32, %c0_i32_0 : i32, i32
  }
  func.func @transform_9(%arg0: i32) -> (i32, i32) {
    %c0_i32 = arith.constant 0 : i32
    %c0_i32_0 = arith.constant 0 : i32
    return %arg0, %c0_i32 : i32, i32
  }
  func.func @transform_10(%arg0: i32) -> (i32, i32) {
    %c0_i32 = arith.constant 0 : i32
    %c0_i32_0 = arith.constant 0 : i32
    return %arg0, %c0_i32 : i32, i32
  }
  func.func @transform_11(%arg0: i32) -> (i32, i32) {
    %c0_i32 = arith.constant 0 : i32
    %c0_i32_0 = arith.constant 0 : i32
    return %arg0, %c0_i32 : i32, i32
  }
}

module attributes {stable_mosaic.version = 11 : i64} {
  func.func @_oproj_kernel(%arg0: i32, %arg1: memref<16x32xf32, #tpu.memory_space<vmem>>, %arg2: memref<16x32xf32, #tpu.memory_space<vmem>>, %arg3: memref<16x32xf32, #tpu.memory_space<vmem>>, %arg4: memref<1x32xf32, #tpu.memory_space<vmem>>, %arg5: memref<1x32xf32, #tpu.memory_space<vmem>>, %arg6: memref<32x32xi8, #tpu.memory_space<vmem>>, %arg7: memref<1x32xf32, #tpu.memory_space<vmem>>, %arg8: memref<1x1xf32, #tpu.memory_space<smem>>, %arg9: memref<16x32xf32, #tpu.memory_space<vmem>>, %arg10: memref<16x32xf32, #tpu.memory_space<vmem>>) attributes {dimension_semantics = [#tpu.dimension_semantics<parallel>], iteration_bounds = array<i64: 1>, scalar_prefetch = 0 : i64, scratch_operands = 0 : i64, tpu.core_type = #tpu.core_type<tc>, window_params = [{transform_indices = @transform_0, window_bounds = array<i64: 16, 32>}, {transform_indices = @transform_1, window_bounds = array<i64: 16, 32>}, {transform_indices = @transform_2, window_bounds = array<i64: 16, 32>}, {pipeline_mode = #tpu.pipeline_mode<synchronous>, transform_indices = @transform_3, window_bounds = array<i64: 1, 32>}, {pipeline_mode = #tpu.pipeline_mode<synchronous>, transform_indices = @transform_4, window_bounds = array<i64: 1, 32>}, {pipeline_mode = #tpu.pipeline_mode<synchronous>, transform_indices = @transform_5, window_bounds = array<i64: 32, 32>}, {pipeline_mode = #tpu.pipeline_mode<synchronous>, transform_indices = @transform_6, window_bounds = array<i64: 1, 32>}, {transform_indices = @transform_7, window_bounds = array<i64: 1, 1>}, {transform_indices = @transform_8, window_bounds = array<i64: 16, 32>}, {transform_indices = @transform_9, window_bounds = array<i64: 16, 32>}]} {
    %c0 = arith.constant 0 : index
    %c0_0 = arith.constant 0 : index
    %0 = vector.load %arg1[%c0, %c0_0] : memref<16x32xf32, #tpu.memory_space<vmem>>, vector<16x32xf32>
    %c0_1 = arith.constant 0 : index
    %c0_2 = arith.constant 0 : index
    %1 = vector.load %arg2[%c0_1, %c0_2] : memref<16x32xf32, #tpu.memory_space<vmem>>, vector<16x32xf32>
    %2 = arith.mulf %0, %0 : vector<16x32xf32>
    %cst = arith.constant dense<0.000000e+00> : vector<16xf32>
    %3 = vector.multi_reduction <add>, %2, %cst [1] : vector<16x32xf32> to vector<16xf32>
    %4 = vector.shape_cast %3 : vector<16xf32> to vector<16x1xf32>
    %cst_3 = arith.constant 3.200000e+01 : f32
    %5 = vector.broadcast %cst_3 : f32 to vector<16x1xf32>
    %6 = arith.divf %4, %5 : vector<16x1xf32>
    %cst_4 = arith.constant 9.99999997E-7 : f32
    %7 = vector.broadcast %cst_4 : f32 to vector<16x1xf32>
    %8 = arith.addf %6, %7 : vector<16x1xf32>
    %9 = math.rsqrt %8 : vector<16x1xf32>
    %10 = vector.broadcast %9 : vector<16x1xf32> to vector<16x32xf32>
    %11 = arith.mulf %0, %10 : vector<16x32xf32>
    %c0_5 = arith.constant 0 : index
    %c0_6 = arith.constant 0 : index
    %12 = vector.load %arg4[%c0_5, %c0_6] : memref<1x32xf32, #tpu.memory_space<vmem>>, vector<1x32xf32>
    %13 = vector.broadcast %12 : vector<1x32xf32> to vector<16x32xf32>
    %14 = arith.mulf %11, %13 : vector<16x32xf32>
    %15 = arith.negf %1 : vector<16x32xf32>
    %16 = math.exp %15 : vector<16x32xf32>
    %cst_7 = arith.constant 1.000000e+00 : f32
    %17 = vector.broadcast %cst_7 : f32 to vector<16x32xf32>
    %18 = arith.addf %17, %16 : vector<16x32xf32>
    %19 = arith.divf %17, %18 : vector<16x32xf32>
    %20 = arith.mulf %1, %19 : vector<16x32xf32>
    %21 = arith.mulf %14, %20 : vector<16x32xf32>
    %22 = arith.mulf %21, %21 : vector<16x32xf32>
    %cst_8 = arith.constant dense<0.000000e+00> : vector<16xf32>
    %23 = vector.multi_reduction <add>, %22, %cst_8 [1] : vector<16x32xf32> to vector<16xf32>
    %24 = vector.shape_cast %23 : vector<16xf32> to vector<16x1xf32>
    %cst_9 = arith.constant 3.200000e+01 : f32
    %25 = vector.broadcast %cst_9 : f32 to vector<16x1xf32>
    %26 = arith.divf %24, %25 : vector<16x1xf32>
    %cst_10 = arith.constant 9.99999993E-9 : f32
    %27 = vector.broadcast %cst_10 : f32 to vector<16x1xf32>
    %28 = arith.addf %26, %27 : vector<16x1xf32>
    %29 = math.rsqrt %28 : vector<16x1xf32>
    %30 = vector.broadcast %29 : vector<16x1xf32> to vector<16x32xf32>
    %31 = arith.mulf %21, %30 : vector<16x32xf32>
    %c0_11 = arith.constant 0 : index
    %c0_12 = arith.constant 0 : index
    %32 = vector.load %arg5[%c0_11, %c0_12] : memref<1x32xf32, #tpu.memory_space<vmem>>, vector<1x32xf32>
    %33 = vector.broadcast %32 : vector<1x32xf32> to vector<16x32xf32>
    %34 = arith.mulf %31, %33 : vector<16x32xf32>
    %35 = math.absf %34 : vector<16x32xf32>
    %cst_13 = arith.constant dense<0xFF800000> : vector<16xf32>
    %36 = vector.multi_reduction <maximumf>, %35, %cst_13 [1] : vector<16x32xf32> to vector<16xf32>
    %37 = vector.shape_cast %36 : vector<16xf32> to vector<16x1xf32>
    %cst_14 = arith.constant 9.99999974E-6 : f32
    %38 = vector.broadcast %cst_14 : f32 to vector<16x1xf32>
    %39 = arith.maximumf %37, %38 : vector<16x1xf32>
    %cst_15 = arith.constant 1.270000e+02 : f32
    %40 = vector.broadcast %cst_15 : f32 to vector<16x1xf32>
    %41 = arith.divf %40, %39 : vector<16x1xf32>
    %42 = vector.broadcast %41 : vector<16x1xf32> to vector<16x32xf32>
    %43 = arith.mulf %34, %42 : vector<16x32xf32>
    %44 = math.roundeven %43 : vector<16x32xf32>
    %cst_16 = arith.constant -1.280000e+02 : f32
    %cst_17 = arith.constant 1.270000e+02 : f32
    %45 = vector.broadcast %cst_16 : f32 to vector<16x32xf32>
    %46 = arith.maximumf %45, %44 : vector<16x32xf32>
    %47 = vector.broadcast %cst_17 : f32 to vector<16x32xf32>
    %48 = arith.minimumf %47, %46 : vector<16x32xf32>
    %49 = arith.truncf %48 : vector<16x32xf32> to vector<16x32xbf16>
    %cst_18 = arith.constant 0.00787401571 : f32
    %50 = vector.broadcast %cst_18 : f32 to vector<16x1xf32>
    %51 = arith.mulf %39, %50 : vector<16x1xf32>
    %c0_19 = arith.constant 0 : index
    %c0_20 = arith.constant 0 : index
    %52 = vector.load %arg6[%c0_19, %c0_20] : memref<32x32xi8, #tpu.memory_space<vmem>>, vector<32x32xi8>
    %53 = arith.sitofp %52 : vector<32x32xi8> to vector<32x32xbf16>
    %cst_21 = arith.constant dense<0.000000e+00> : vector<16x32xf32>
    %54 = tpu.matmul %49, %53, %cst_21 {dimension_numbers = #tpu.dot_dimension_numbers<[1], [0], [0], [1], [0, 0, 1, 1], [], []>} : vector<16x32xbf16>, vector<32x32xbf16>, vector<16x32xf32> -> vector<16x32xf32>
    %c0_22 = arith.constant 0 : index
    %c0_23 = arith.constant 0 : index
    %55 = memref.load %arg8[%c0_22, %c0_23] : memref<1x1xf32, #tpu.memory_space<smem>>
    %56 = vector.broadcast %55 : f32 to vector<16x1xf32>
    %57 = arith.mulf %51, %56 : vector<16x1xf32>
    %58 = vector.broadcast %57 : vector<16x1xf32> to vector<16x32xf32>
    %59 = arith.mulf %54, %58 : vector<16x32xf32>
    %c0_24 = arith.constant 0 : index
    %c0_25 = arith.constant 0 : index
    %60 = vector.load %arg3[%c0_24, %c0_25] : memref<16x32xf32, #tpu.memory_space<vmem>>, vector<16x32xf32>
    %61 = arith.addf %59, %60 : vector<16x32xf32>
    %c0_26 = arith.constant 0 : index
    %c0_27 = arith.constant 0 : index
    %62 = vector.load %arg9[%c0_26, %c0_27] : memref<16x32xf32, #tpu.memory_space<vmem>>, vector<16x32xf32>
    tpu.vector_store %arg9[%c0_26, %c0_27], %61 {strides = array<i32>} : memref<16x32xf32, #tpu.memory_space<vmem>>, vector<16x32xf32>,
    %63 = arith.mulf %61, %61 : vector<16x32xf32>
    %cst_28 = arith.constant dense<0.000000e+00> : vector<16xf32>
    %64 = vector.multi_reduction <add>, %63, %cst_28 [1] : vector<16x32xf32> to vector<16xf32>
    %65 = vector.shape_cast %64 : vector<16xf32> to vector<16x1xf32>
    %cst_29 = arith.constant 3.200000e+01 : f32
    %66 = vector.broadcast %cst_29 : f32 to vector<16x1xf32>
    %67 = arith.divf %65, %66 : vector<16x1xf32>
    %cst_30 = arith.constant 9.99999997E-7 : f32
    %68 = vector.broadcast %cst_30 : f32 to vector<16x1xf32>
    %69 = arith.addf %67, %68 : vector<16x1xf32>
    %70 = math.rsqrt %69 : vector<16x1xf32>
    %71 = vector.broadcast %70 : vector<16x1xf32> to vector<16x32xf32>
    %72 = arith.mulf %61, %71 : vector<16x32xf32>
    %c0_31 = arith.constant 0 : index
    %c0_32 = arith.constant 0 : index
    %73 = vector.load %arg7[%c0_31, %c0_32] : memref<1x32xf32, #tpu.memory_space<vmem>>, vector<1x32xf32>
    %74 = vector.broadcast %73 : vector<1x32xf32> to vector<16x32xf32>
    %75 = arith.mulf %72, %74 : vector<16x32xf32>
    %c0_33 = arith.constant 0 : index
    %c0_34 = arith.constant 0 : index
    %76 = vector.load %arg10[%c0_33, %c0_34] : memref<16x32xf32, #tpu.memory_space<vmem>>, vector<16x32xf32>
    tpu.vector_store %arg10[%c0_33, %c0_34], %75 {strides = array<i32>} : memref<16x32xf32, #tpu.memory_space<vmem>>, vector<16x32xf32>,
    return
  }
  func.func @transform_0(%arg0: i32) -> (i32, i32) {
    %c0_i32 = arith.constant 0 : i32
    %c0_i32_0 = arith.constant 0 : i32
    return %arg0, %c0_i32 : i32, i32
  }
  func.func @transform_1(%arg0: i32) -> (i32, i32) {
    %c0_i32 = arith.constant 0 : i32
    %c0_i32_0 = arith.constant 0 : i32
    return %arg0, %c0_i32 : i32, i32
  }
  func.func @transform_2(%arg0: i32) -> (i32, i32) {
    %c0_i32 = arith.constant 0 : i32
    %c0_i32_0 = arith.constant 0 : i32
    return %arg0, %c0_i32 : i32, i32
  }
  func.func @transform_3(%arg0: i32) -> (i32, i32) {
    %c0_i32 = arith.constant 0 : i32
    %c0_i32_0 = arith.constant 0 : i32
    %c0_i32_1 = arith.constant 0 : i32
    return %c0_i32, %c0_i32_0 : i32, i32
  }
  func.func @transform_4(%arg0: i32) -> (i32, i32) {
    %c0_i32 = arith.constant 0 : i32
    %c0_i32_0 = arith.constant 0 : i32
    %c0_i32_1 = arith.constant 0 : i32
    return %c0_i32, %c0_i32_0 : i32, i32
  }
  func.func @transform_5(%arg0: i32) -> (i32, i32) {
    %c0_i32 = arith.constant 0 : i32
    %c0_i32_0 = arith.constant 0 : i32
    %c0_i32_1 = arith.constant 0 : i32
    return %c0_i32, %c0_i32_0 : i32, i32
  }
  func.func @transform_6(%arg0: i32) -> (i32, i32) {
    %c0_i32 = arith.constant 0 : i32
    %c0_i32_0 = arith.constant 0 : i32
    %c0_i32_1 = arith.constant 0 : i32
    return %c0_i32, %c0_i32_0 : i32, i32
  }
  func.func @transform_7(%arg0: i32) -> (i32, i32) {
    %c0_i32 = arith.constant 0 : i32
    %c0_i32_0 = arith.constant 0 : i32
    %c0_i32_1 = arith.constant 0 : i32
    return %c0_i32, %c0_i32_0 : i32, i32
  }
  func.func @transform_8(%arg0: i32) -> (i32, i32) {
    %c0_i32 = arith.constant 0 : i32
    %c0_i32_0 = arith.constant 0 : i32
    return %arg0, %c0_i32 : i32, i32
  }
  func.func @transform_9(%arg0: i32) -> (i32, i32) {
    %c0_i32 = arith.constant 0 : i32
    %c0_i32_0 = arith.constant 0 : i32
    return %arg0, %c0_i32 : i32, i32
  }
}

module attributes {stable_mosaic.version = 11 : i64} {
  func.func @_mlp_kernel(%arg0: i32, %arg1: memref<16x32xf32, #tpu.memory_space<vmem>>, %arg2: memref<16x32xf32, #tpu.memory_space<vmem>>, %arg3: memref<1x32xf32, #tpu.memory_space<vmem>>, %arg4: memref<32x512xi8, #tpu.memory_space<vmem>>, %arg5: memref<1x256xf32, #tpu.memory_space<vmem>>, %arg6: memref<256x32xi8, #tpu.memory_space<vmem>>, %arg7: memref<1x2xf32, #tpu.memory_space<smem>>, %arg8: memref<16x32xf32, #tpu.memory_space<vmem>>) attributes {dimension_semantics = [#tpu.dimension_semantics<parallel>], iteration_bounds = array<i64: 1>, scalar_prefetch = 0 : i64, scratch_operands = 0 : i64, tpu.core_type = #tpu.core_type<tc>, window_params = [{transform_indices = @transform_0, window_bounds = array<i64: 16, 32>}, {transform_indices = @transform_1, window_bounds = array<i64: 16, 32>}, {pipeline_mode = #tpu.pipeline_mode<synchronous>, transform_indices = @transform_2, window_bounds = array<i64: 1, 32>}, {pipeline_mode = #tpu.pipeline_mode<synchronous>, transform_indices = @transform_3, window_bounds = array<i64: 32, 512>}, {pipeline_mode = #tpu.pipeline_mode<synchronous>, transform_indices = @transform_4, window_bounds = array<i64: 1, 256>}, {pipeline_mode = #tpu.pipeline_mode<synchronous>, transform_indices = @transform_5, window_bounds = array<i64: 256, 32>}, {transform_indices = @transform_6, window_bounds = array<i64: 1, 2>}, {transform_indices = @transform_7, window_bounds = array<i64: 16, 32>}]} {
    %c0 = arith.constant 0 : index
    %c0_0 = arith.constant 0 : index
    %0 = vector.load %arg1[%c0, %c0_0] : memref<16x32xf32, #tpu.memory_space<vmem>>, vector<16x32xf32>
    %1 = arith.mulf %0, %0 : vector<16x32xf32>
    %cst = arith.constant dense<0.000000e+00> : vector<16xf32>
    %2 = vector.multi_reduction <add>, %1, %cst [1] : vector<16x32xf32> to vector<16xf32>
    %3 = vector.shape_cast %2 : vector<16xf32> to vector<16x1xf32>
    %cst_1 = arith.constant 3.200000e+01 : f32
    %4 = vector.broadcast %cst_1 : f32 to vector<16x1xf32>
    %5 = arith.divf %3, %4 : vector<16x1xf32>
    %cst_2 = arith.constant 9.99999993E-9 : f32
    %6 = vector.broadcast %cst_2 : f32 to vector<16x1xf32>
    %7 = arith.addf %5, %6 : vector<16x1xf32>
    %8 = math.rsqrt %7 : vector<16x1xf32>
    %9 = vector.broadcast %8 : vector<16x1xf32> to vector<16x32xf32>
    %10 = arith.mulf %0, %9 : vector<16x32xf32>
    %c0_3 = arith.constant 0 : index
    %c0_4 = arith.constant 0 : index
    %11 = vector.load %arg3[%c0_3, %c0_4] : memref<1x32xf32, #tpu.memory_space<vmem>>, vector<1x32xf32>
    %12 = vector.broadcast %11 : vector<1x32xf32> to vector<16x32xf32>
    %13 = arith.mulf %10, %12 : vector<16x32xf32>
    %14 = math.absf %13 : vector<16x32xf32>
    %cst_5 = arith.constant dense<0xFF800000> : vector<16xf32>
    %15 = vector.multi_reduction <maximumf>, %14, %cst_5 [1] : vector<16x32xf32> to vector<16xf32>
    %16 = vector.shape_cast %15 : vector<16xf32> to vector<16x1xf32>
    %cst_6 = arith.constant 9.99999974E-6 : f32
    %17 = vector.broadcast %cst_6 : f32 to vector<16x1xf32>
    %18 = arith.maximumf %16, %17 : vector<16x1xf32>
    %cst_7 = arith.constant 1.270000e+02 : f32
    %19 = vector.broadcast %cst_7 : f32 to vector<16x1xf32>
    %20 = arith.divf %19, %18 : vector<16x1xf32>
    %21 = vector.broadcast %20 : vector<16x1xf32> to vector<16x32xf32>
    %22 = arith.mulf %13, %21 : vector<16x32xf32>
    %23 = math.roundeven %22 : vector<16x32xf32>
    %cst_8 = arith.constant -1.280000e+02 : f32
    %cst_9 = arith.constant 1.270000e+02 : f32
    %24 = vector.broadcast %cst_8 : f32 to vector<16x32xf32>
    %25 = arith.maximumf %24, %23 : vector<16x32xf32>
    %26 = vector.broadcast %cst_9 : f32 to vector<16x32xf32>
    %27 = arith.minimumf %26, %25 : vector<16x32xf32>
    %28 = arith.truncf %27 : vector<16x32xf32> to vector<16x32xbf16>
    %cst_10 = arith.constant 0.00787401571 : f32
    %29 = vector.broadcast %cst_10 : f32 to vector<16x1xf32>
    %30 = arith.mulf %18, %29 : vector<16x1xf32>
    %c0_11 = arith.constant 0 : index
    %c0_12 = arith.constant 0 : index
    %31 = vector.load %arg4[%c0_11, %c0_12] : memref<32x512xi8, #tpu.memory_space<vmem>>, vector<32x512xi8>
    %32 = arith.sitofp %31 : vector<32x512xi8> to vector<32x512xbf16>
    %cst_13 = arith.constant dense<0.000000e+00> : vector<16x512xf32>
    %33 = tpu.matmul %28, %32, %cst_13 {dimension_numbers = #tpu.dot_dimension_numbers<[1], [0], [0], [1], [0, 0, 1, 1], [], []>} : vector<16x32xbf16>, vector<32x512xbf16>, vector<16x512xf32> -> vector<16x512xf32>
    %c0_14 = arith.constant 0 : index
    %c0_15 = arith.constant 0 : index
    %34 = memref.load %arg7[%c0_14, %c0_15] : memref<1x2xf32, #tpu.memory_space<smem>>
    %35 = vector.broadcast %34 : f32 to vector<16x1xf32>
    %36 = arith.mulf %30, %35 : vector<16x1xf32>
    %37 = vector.broadcast %36 : vector<16x1xf32> to vector<16x512xf32>
    %38 = arith.mulf %33, %37 : vector<16x512xf32>
    %39 = vector.extract_strided_slice %38 {offsets = [0, 0], sizes = [16, 256], strides = [1, 1]} : vector<16x512xf32> to vector<16x256xf32>
    %40 = vector.extract_strided_slice %38 {offsets = [0, 256], sizes = [16, 256], strides = [1, 1]} : vector<16x512xf32> to vector<16x256xf32>
    %41 = arith.negf %39 : vector<16x256xf32>
    %42 = math.exp %41 : vector<16x256xf32>
    %cst_16 = arith.constant 1.000000e+00 : f32
    %43 = vector.broadcast %cst_16 : f32 to vector<16x256xf32>
    %44 = arith.addf %43, %42 : vector<16x256xf32>
    %45 = arith.divf %43, %44 : vector<16x256xf32>
    %46 = arith.mulf %39, %45 : vector<16x256xf32>
    %47 = arith.mulf %46, %40 : vector<16x256xf32>
    %48 = arith.mulf %47, %47 : vector<16x256xf32>
    %cst_17 = arith.constant dense<0.000000e+00> : vector<16xf32>
    %49 = vector.multi_reduction <add>, %48, %cst_17 [1] : vector<16x256xf32> to vector<16xf32>
    %50 = vector.shape_cast %49 : vector<16xf32> to vector<16x1xf32>
    %cst_18 = arith.constant 2.560000e+02 : f32
    %51 = vector.broadcast %cst_18 : f32 to vector<16x1xf32>
    %52 = arith.divf %50, %51 : vector<16x1xf32>
    %cst_19 = arith.constant 9.99999993E-9 : f32
    %53 = vector.broadcast %cst_19 : f32 to vector<16x1xf32>
    %54 = arith.addf %52, %53 : vector<16x1xf32>
    %55 = math.rsqrt %54 : vector<16x1xf32>
    %56 = vector.broadcast %55 : vector<16x1xf32> to vector<16x256xf32>
    %57 = arith.mulf %47, %56 : vector<16x256xf32>
    %c0_20 = arith.constant 0 : index
    %c0_21 = arith.constant 0 : index
    %58 = vector.load %arg5[%c0_20, %c0_21] : memref<1x256xf32, #tpu.memory_space<vmem>>, vector<1x256xf32>
    %59 = vector.broadcast %58 : vector<1x256xf32> to vector<16x256xf32>
    %60 = arith.mulf %57, %59 : vector<16x256xf32>
    %61 = math.absf %60 : vector<16x256xf32>
    %cst_22 = arith.constant dense<0xFF800000> : vector<16xf32>
    %62 = vector.multi_reduction <maximumf>, %61, %cst_22 [1] : vector<16x256xf32> to vector<16xf32>
    %63 = vector.shape_cast %62 : vector<16xf32> to vector<16x1xf32>
    %cst_23 = arith.constant 9.99999974E-6 : f32
    %64 = vector.broadcast %cst_23 : f32 to vector<16x1xf32>
    %65 = arith.maximumf %63, %64 : vector<16x1xf32>
    %cst_24 = arith.constant 1.270000e+02 : f32
    %66 = vector.broadcast %cst_24 : f32 to vector<16x1xf32>
    %67 = arith.divf %66, %65 : vector<16x1xf32>
    %68 = vector.broadcast %67 : vector<16x1xf32> to vector<16x256xf32>
    %69 = arith.mulf %60, %68 : vector<16x256xf32>
    %70 = math.roundeven %69 : vector<16x256xf32>
    %cst_25 = arith.constant -1.280000e+02 : f32
    %cst_26 = arith.constant 1.270000e+02 : f32
    %71 = vector.broadcast %cst_25 : f32 to vector<16x256xf32>
    %72 = arith.maximumf %71, %70 : vector<16x256xf32>
    %73 = vector.broadcast %cst_26 : f32 to vector<16x256xf32>
    %74 = arith.minimumf %73, %72 : vector<16x256xf32>
    %75 = arith.truncf %74 : vector<16x256xf32> to vector<16x256xbf16>
    %cst_27 = arith.constant 0.00787401571 : f32
    %76 = vector.broadcast %cst_27 : f32 to vector<16x1xf32>
    %77 = arith.mulf %65, %76 : vector<16x1xf32>
    %c0_28 = arith.constant 0 : index
    %c0_29 = arith.constant 0 : index
    %78 = vector.load %arg6[%c0_28, %c0_29] : memref<256x32xi8, #tpu.memory_space<vmem>>, vector<256x32xi8>
    %79 = arith.sitofp %78 : vector<256x32xi8> to vector<256x32xbf16>
    %cst_30 = arith.constant dense<0.000000e+00> : vector<16x32xf32>
    %80 = tpu.matmul %75, %79, %cst_30 {dimension_numbers = #tpu.dot_dimension_numbers<[1], [0], [0], [1], [0, 0, 1, 1], [], []>} : vector<16x256xbf16>, vector<256x32xbf16>, vector<16x32xf32> -> vector<16x32xf32>
    %c0_31 = arith.constant 0 : index
    %c1 = arith.constant 1 : index
    %81 = memref.load %arg7[%c0_31, %c1] : memref<1x2xf32, #tpu.memory_space<smem>>
    %82 = vector.broadcast %81 : f32 to vector<16x1xf32>
    %83 = arith.mulf %77, %82 : vector<16x1xf32>
    %84 = vector.broadcast %83 : vector<16x1xf32> to vector<16x32xf32>
    %85 = arith.mulf %80, %84 : vector<16x32xf32>
    %c0_32 = arith.constant 0 : index
    %c0_33 = arith.constant 0 : index
    %86 = vector.load %arg2[%c0_32, %c0_33] : memref<16x32xf32, #tpu.memory_space<vmem>>, vector<16x32xf32>
    %87 = arith.addf %86, %85 : vector<16x32xf32>
    %c0_34 = arith.constant 0 : index
    %c0_35 = arith.constant 0 : index
    %88 = vector.load %arg8[%c0_34, %c0_35] : memref<16x32xf32, #tpu.memory_space<vmem>>, vector<16x32xf32>
    tpu.vector_store %arg8[%c0_34, %c0_35], %87 {strides = array<i32>} : memref<16x32xf32, #tpu.memory_space<vmem>>, vector<16x32xf32>,
    return
  }
  func.func @transform_0(%arg0: i32) -> (i32, i32) {
    %c0_i32 = arith.constant 0 : i32
    %c0_i32_0 = arith.constant 0 : i32
    return %arg0, %c0_i32 : i32, i32
  }
  func.func @transform_1(%arg0: i32) -> (i32, i32) {
    %c0_i32 = arith.constant 0 : i32
    %c0_i32_0 = arith.constant 0 : i32
    return %arg0, %c0_i32 : i32, i32
  }
  func.func @transform_2(%arg0: i32) -> (i32, i32) {
    %c0_i32 = arith.constant 0 : i32
    %c0_i32_0 = arith.constant 0 : i32
    %c0_i32_1 = arith.constant 0 : i32
    return %c0_i32, %c0_i32_0 : i32, i32
  }
  func.func @transform_3(%arg0: i32) -> (i32, i32) {
    %c0_i32 = arith.constant 0 : i32
    %c0_i32_0 = arith.constant 0 : i32
    %c0_i32_1 = arith.constant 0 : i32
    return %c0_i32, %c0_i32_0 : i32, i32
  }
  func.func @transform_4(%arg0: i32) -> (i32, i32) {
    %c0_i32 = arith.constant 0 : i32
    %c0_i32_0 = arith.constant 0 : i32
    %c0_i32_1 = arith.constant 0 : i32
    return %c0_i32, %c0_i32_0 : i32, i32
  }
  func.func @transform_5(%arg0: i32) -> (i32, i32) {
    %c0_i32 = arith.constant 0 : i32
    %c0_i32_0 = arith.constant 0 : i32
    %c0_i32_1 = arith.constant 0 : i32
    return %c0_i32, %c0_i32_0 : i32, i32
  }
  func.func @transform_6(%arg0: i32) -> (i32, i32) {
    %c0_i32 = arith.constant 0 : i32
    %c0_i32_0 = arith.constant 0 : i32
    %c0_i32_1 = arith.constant 0 : i32
    return %c0_i32, %c0_i32_0 : i32, i32
  }
  func.func @transform_7(%arg0: i32) -> (i32, i32) {
    %c0_i32 = arith.constant 0 : i32
    %c0_i32_0 = arith.constant 0 : i32
    return %arg0, %c0_i32 : i32, i32
  }
}

</mosaic_0001>

<llo_original>
// kernel: tpu_custom_call.1
$region0: #{tpu_custom_call.1}
  #allocation0 [shape = 'u32[]', space=smem, size = 0x4, offset = 0x4, fixed_abs, tag = 'smem constant byte address 0x4 - core index']
  #allocation1 [shape = 'u32[144,128]{1,0:T(1,128)}', space=vmem, size = 0x12000, scoped, tag = 'internal scratch']
  %s0 = inlined_call_operand.hbm [shape: f32[8,128], index: 0, kind: input, shape index: {}]
  %s1 = inlined_call_operand.hbm [shape: f32[8,128], index: 1, kind: output, shape index: {}]
  %s2 = sld [smem:[#allocation0]]
  $region41: #{tpu_custom_call.1} parent=0
    _
  %s4 = ssub.s32 1, %s2
  %s5 = scalar_select 0, %s4, %s2
  $region1: #{tpu_custom_call.1} parent=0
    #allocation2 [shape = 'u8[4096]{0}', space=vmem, size = 0x1000, scoped, tag = 'input window, operand 0, single buffered']
    #allocation3 [shape = 's32[2]{0}', space=sflag, size = 0x8, scoped, tag = 'scoped memory for tpu_custom_call.1']
    #allocation4 [shape = 's32[2]{0}', space=sflag, size = 0x8, scoped, tag = 'scoped memory for tpu_custom_call.1']
    #allocation5 [shape = 'u8[4096]{0}', space=vmem, size = 0x1000, scoped, tag = 'output window, operand 0, single buffered']
    %6 = vsyncpa [#allocation3], 0
    %7 = vsyncpa [#allocation4], 0
    loop: start=0, step=1, limit=4
    $region2: #{tpu_custom_call.1} parent=1 // loop_pre_header
      _
    $region3: #{tpu_custom_call.1} parent=1 // loop_header
      %s9 = sphi 0, %s13
      %p10 = scmp.ge.s32.totalorder %s9, 4
      %s17 = sphi 0, %s17
      %s19 = sphi 0, %s17
      %s20 = sphi 0, %s19
      %s34 = sphi 0, %s20
      %s38 = sphi 0, %s38
      %s40 = sphi 0, %s38
      %s41 = sphi 0, %s40
      %s55 = sphi 0, %s41
    $region4: #{tpu_custom_call.1} parent=1 // loop_header_branch
      %12 = sbr.rel (%p10) target = $region8
    $region5: #{tpu_custom_call.1} parent=1 // loop_body
      %s14 = ssub.s32 %s9, 1
      %s15 = ssub.s32 %s9, 2
      %s16 = sadd.s32 %s9, 1
      %s18 = sadd.s32 %s17, 1
      %p21 = scmp.eq.s32.totalorder %s9, 1
      %p22 = scmp.ne.s32.totalorder %s17, %s19
      %p23 = scmp.eq.s32.totalorder %s9, 0
      %p24 = por %p22, %p23
      %p25 = scmp.ne.s32.totalorder %s17, %s19
      %p26 = scmp.eq.s32.totalorder %s14, 1
      %p27 = por %p25, %p26
      %p28 = scmp.ne.s32.totalorder %s19, %s20
      %p29 = scmp.eq.s32.totalorder %s14, 0
      %p30 = por %p28, %p29
      %p31 = scmp.ne.s32.totalorder %s19, %s20
      %p32 = scmp.eq.s32.totalorder %s15, 1
      %p33 = por %p31, %p32
      %p35 = scmp.ne.s32.totalorder %s20, %s34
      %p36 = scmp.eq.s32.totalorder %s15, 0
      %p37 = por %p35, %p36
      %s39 = sadd.s32 %s38, 1
      %p42 = scmp.eq.s32.totalorder %s9, 1
      %p43 = scmp.ne.s32.totalorder %s38, %s40
      %p44 = scmp.eq.s32.totalorder %s9, 0
      %p45 = por %p43, %p44
      %p46 = scmp.ne.s32.totalorder %s38, %s40
      %p47 = scmp.eq.s32.totalorder %s14, 1
      %p48 = por %p46, %p47
      %p49 = scmp.ne.s32.totalorder %s40, %s41
      %p50 = scmp.eq.s32.totalorder %s14, 0
      %p51 = por %p49, %p50
      %p52 = scmp.ne.s32.totalorder %s40, %s41
      %p53 = scmp.eq.s32.totalorder %s15, 1
      %p54 = por %p52, %p53
      %p56 = scmp.ne.s32.totalorder %s41, %s55
      %p57 = scmp.eq.s32.totalorder %s15, 0
      %p58 = por %p56, %p57
      %p59 = scmp.le.s32.totalorder 1, %s9
      %p60 = scmp.lt.s32.totalorder %s9, 3
      %p61 = pnand %p59, %p60
      %p62 = pneg %p61
      // Predicated region
      $region9: #{tpu_custom_call.1} parent=5 // pred_check
        _
      $region10: #{tpu_custom_call.1} parent=5 // pred_check_branch
        %64 = sbr.rel (%p61) target = $region12
      $region11: #{tpu_custom_call.1} parent=5 // pred_region
        %s65 = ssub.s32 %s9, 1
        // Predicated region
        $region13: #{tpu_custom_call.1} parent=11 // pred_check
          %p66 = pneg %p30
        $region14: #{tpu_custom_call.1} parent=11 // pred_check_branch
          %68 = sbr.rel (%p66) target = $region16
        $region15: #{tpu_custom_call.1} parent=11 // pred_region
          %s70 = ssub.s32 128, 128
          %71 = vsyncadd [#allocation3], %s70
          %s73 = sshll.u32 [#allocation2], 4
          %s74 = int_to_ptr.vmem [resolvable:$true] %s73
          %76 = dma.hbm_to_vmem [thread:$0]  %s0, 128, %s74, [#allocation3]
        $region16: #{tpu_custom_call.1} parent=11 // pred_fallthru
          _
      $region12: #{tpu_custom_call.1} parent=5 // pred_fallthru
        _
      %p77 = scmp.lt.s32.totalorder %s9, 2
      // Predicated region
      $region17: #{tpu_custom_call.1} parent=5 // pred_check
        %p78 = pneg %p77
      $region18: #{tpu_custom_call.1} parent=5 // pred_check_branch
        %80 = sbr.rel (%p78) target = $region20
      $region19: #{tpu_custom_call.1} parent=5 // pred_region
        _
      $region20: #{tpu_custom_call.1} parent=5 // pred_fallthru
        _
      %p81 = scmp.le.s32.totalorder 1, %s9
      %p82 = scmp.lt.s32.totalorder %s9, 3
      %p83 = pnand %p81, %p82
      %p84 = pneg %p83
      // Predicated region
      $region21: #{tpu_custom_call.1} parent=5 // pred_check
        _
      $region22: #{tpu_custom_call.1} parent=5 // pred_check_branch
        %86 = sbr.rel (%p83) target = $region24
      $region23: #{tpu_custom_call.1} parent=5 // pred_region
        %s87 = ssub.s32 %s9, 1
        // Predicated region
        $region25: #{tpu_custom_call.1} parent=23 // pred_check
          %p88 = pneg %p30
        $region26: #{tpu_custom_call.1} parent=23 // pred_check_branch
          %90 = sbr.rel (%p88) target = $region28
        $region27: #{tpu_custom_call.1} parent=23 // pred_region
          %91 = dma.done [#allocation3], 128
        $region28: #{tpu_custom_call.1} parent=23 // pred_fallthru
          _
        %p92 = pneg %p30
        %p93 = pneg %p27
        %p94 = pneg %p51
        %p95 = pneg %p48
        %v96 = vld [vmem:[#allocation2] sm:$0xff]
        %v97 = vadd.f32 %v96, 1.0
        %98 = vst [vmem:[#allocation5] sm:$0xff] %v97
        // Predicated region
        $region29: #{tpu_custom_call.1} parent=23 // pred_check
          %p99 = pneg %p48
        $region30: #{tpu_custom_call.1} parent=23 // pred_check_branch
          %101 = sbr.rel (%p99) target = $region32
        $region31: #{tpu_custom_call.1} parent=23 // pred_region
          %s103 = ssub.s32 128, 128
          %104 = vsyncadd [#allocation4], %s103
          %s106 = sshll.u32 [#allocation5], 4
          %s107 = int_to_ptr.vmem [resolvable:$true] %s106
          %109 = dma.vmem_to_hbm [thread:$0]  %s107, 128, %s1, [#allocation4]
        $region32: #{tpu_custom_call.1} parent=23 // pred_fallthru
          _
        // Predicated region
        $region33: #{tpu_custom_call.1} parent=23 // pred_check
          %p110 = pneg %p48
        $region34: #{tpu_custom_call.1} parent=23 // pred_check_branch
          %112 = sbr.rel (%p110) target = $region36
        $region35: #{tpu_custom_call.1} parent=23 // pred_region
          %113 = dma.done [#allocation4], 128
        $region36: #{tpu_custom_call.1} parent=23 // pred_fallthru
          _
      $region24: #{tpu_custom_call.1} parent=5 // pred_fallthru
        _
      %p114 = scmp.le.s32.totalorder 2, %s9
      // Predicated region
      $region37: #{tpu_custom_call.1} parent=5 // pred_check
        %p115 = pneg %p114
      $region38: #{tpu_custom_call.1} parent=5 // pred_check_branch
        %117 = sbr.rel (%p115) target = $region40
      $region39: #{tpu_custom_call.1} parent=5 // pred_region
        %s118 = ssub.s32 %s9, 2
      $region40: #{tpu_custom_call.1} parent=5 // pred_fallthru
        _
    $region6: #{tpu_custom_call.1} parent=1 // loop_footer
      %s13 = sadd.s32 1, %s9
    $region7: #{tpu_custom_call.1} parent=1 // loop_footer_branch
      %8 = sbr.rel target = $region3
    $region8: #{tpu_custom_call.1} parent=1 // loop_exit
      _
    %119 = vsyncpa [#allocation3], 1
    %s120 = scalar_lea.sflag [#allocation3], 1
    %121 = vsyncpa %s120, 1
    %122 = vsyncpa [#allocation4], 1
    %s123 = scalar_lea.sflag [#allocation4], 1
    %124 = vsyncpa %s123, 1

// kernel: hgrn_bit_block.5
$region0: #{hgrn_bit_block.5}
  #allocation0 [shape = 'u32[]', space=smem, size = 0x4, offset = 0x4, fixed_abs, tag = 'smem constant byte address 0x4 - core index']
  #allocation1 [shape = 'u32[144,128]{1,0:T(1,128)}', space=vmem, size = 0x12000, scoped, tag = 'internal scratch']
  #allocation2 [shape = 'f32[1,32]{1,0:T(1,128)}', space=vmem, size = 0x200, scoped, tag = 'scratch operand']
  %s0 = inlined_call_operand.vmem [shape: f32[2,8,32], index: 0, kind: input, shape index: {}]
  %s1 = inlined_call_operand.vmem [shape: f32[2,8,32], index: 1, kind: input, shape index: {}]
  %s2 = inlined_call_operand.vmem [shape: f32[2,8,32], index: 2, kind: output, shape index: {}]
  %s3 = sld [smem:[#allocation0]]
  $region45: #{hgrn_bit_block.5} parent=0
    _
  %s5 = ssub.s32 1, %s3
  %s6 = scalar_select 0, %s5, %s3
  loop: start=0, step=1, limit=4
  $region2: #{hgrn_bit_block.5} parent=0 // loop_pre_header
    _
  $region3: #{hgrn_bit_block.5} parent=0 // loop_header
    %s8 = sphi 0, %s12
    %p9 = scmp.ge.s32.totalorder %s8, 4
    %s15 = sphi 0, %s34
    %s16 = sphi 0, %s30
    %s17 = sphi 0, %s26
    %s18 = sphi 0, %s15
    %s19 = sphi 0, %s16
    %s20 = sphi 0, %s17
    %s21 = sphi 0, %s18
    %s22 = sphi 0, %s19
    %s23 = sphi 0, %s20
    %s41 = sphi 0, %s43
    %s44 = sphi 0, %s41
    %s45 = sphi 0, %s44
    %s61 = sphi 0, %s45
    %s71 = sphi 0, %s73
    %s74 = sphi 0, %s71
    %s75 = sphi 0, %s74
    %s91 = sphi 0, %s75
    %s101 = sphi 0, %s103
    %s104 = sphi 0, %s101
    %s105 = sphi 0, %s104
    %s121 = sphi 0, %s105
  $region4: #{hgrn_bit_block.5} parent=0 // loop_header_branch
    %11 = sbr.rel (%p9) target = $region8
  $region5: #{hgrn_bit_block.5} parent=0 // loop_body
    %s13 = ssub.s32 %s8, 1
    %s14 = ssub.s32 %s8, 2
    %s24 = sadd.s32 1, %s17
    %p25 = scmp.ge.s32.totalorder %s24, 1
    %s26 = scalar_select %p25, 0, %s24
    %s27 = sadd.s32 1, %s16
    %s28 = scalar_select %p25, %s27, %s16
    %p29 = scmp.ge.s32.totalorder %s28, 1
    %s30 = scalar_select %p29, 0, %s28
    %s31 = sadd.s32 1, %s15
    %s32 = scalar_select %p29, %s31, %s15
    %p33 = scmp.ge.s32.totalorder %s32, 2
    %s34 = scalar_select %p33, 0, %s32
    %s35 = ssub.s32 %s15, %s34
    %s36 = ssub.s32 %s17, %s26
    %s37 = sor.u32 %s35, %s36
    %s38 = ssub.s32 %s16, %s30
    %s39 = sor.u32 %s37, %s38
    %p40 = scmp.eq.s32.totalorder %s39, 0
    %s42 = sadd.s32 %s41, 1
    %s43 = scalar_select %p40, %s41, %s42
    %p46 = pneg %p40
    %p47 = scmp.eq.s32.totalorder %s8, 1
    %p48 = por %p46, %p47
    %p49 = scmp.ne.s32.totalorder %s41, %s44
    %p50 = scmp.eq.s32.totalorder %s8, 0
    %p51 = por %p49, %p50
    %p52 = scmp.ne.s32.totalorder %s41, %s44
    %p53 = scmp.eq.s32.totalorder %s13, 1
    %p54 = por %p52, %p53
    %p55 = scmp.ne.s32.totalorder %s44, %s45
    %p56 = scmp.eq.s32.totalorder %s13, 0
    %p57 = por %p55, %p56
    %p58 = scmp.ne.s32.totalorder %s44, %s45
    %p59 = scmp.eq.s32.totalorder %s14, 1
    %p60 = por %p58, %p59
    %p62 = scmp.ne.s32.totalorder %s45, %s61
    %p63 = scmp.eq.s32.totalorder %s14, 0
    %p64 = por %p62, %p63
    %s65 = ssub.s32 %s15, %s34
    %s66 = ssub.s32 %s17, %s26
    %s67 = sor.u32 %s65, %s66
    %s68 = ssub.s32 %s16, %s30
    %s69 = sor.u32 %s67, %s68
    %p70 = scmp.eq.s32.totalorder %s69, 0
    %s72 = sadd.s32 %s71, 1
    %s73 = scalar_select %p70, %s71, %s72
    %p76 = pneg %p70
    %p77 = scmp.eq.s32.totalorder %s8, 1
    %p78 = por %p76, %p77
    %p79 = scmp.ne.s32.totalorder %s71, %s74
    %p80 = scmp.eq.s32.totalorder %s8, 0
    %p81 = por %p79, %p80
    %p82 = scmp.ne.s32.totalorder %s71, %s74
    %p83 = scmp.eq.s32.totalorder %s13, 1
    %p84 = por %p82, %p83
    %p85 = scmp.ne.s32.totalorder %s74, %s75
    %p86 = scmp.eq.s32.totalorder %s13, 0
    %p87 = por %p85, %p86
    %p88 = scmp.ne.s32.totalorder %s74, %s75
    %p89 = scmp.eq.s32.totalorder %s14, 1
    %p90 = por %p88, %p89
    %p92 = scmp.ne.s32.totalorder %s75, %s91
    %p93 = scmp.eq.s32.totalorder %s14, 0
    %p94 = por %p92, %p93
    %s95 = ssub.s32 %s15, %s34
    %s96 = ssub.s32 %s17, %s26
    %s97 = sor.u32 %s95, %s96
    %s98 = ssub.s32 %s16, %s30
    %s99 = sor.u32 %s97, %s98
    %p100 = scmp.eq.s32.totalorder %s99, 0
    %s102 = sadd.s32 %s101, 1
    %s103 = scalar_select %p100, %s101, %s102
    %p106 = pneg %p100
    %p107 = scmp.eq.s32.totalorder %s8, 1
    %p108 = por %p106, %p107
    %p109 = scmp.ne.s32.totalorder %s101, %s104
    %p110 = scmp.eq.s32.totalorder %s8, 0
    %p111 = por %p109, %p110
    %p112 = scmp.ne.s32.totalorder %s101, %s104
    %p113 = scmp.eq.s32.totalorder %s13, 1
    %p114 = por %p112, %p113
    %p115 = scmp.ne.s32.totalorder %s104, %s105
    %p116 = scmp.eq.s32.totalorder %s13, 0
    %p117 = por %p115, %p116
    %p118 = scmp.ne.s32.totalorder %s104, %s105
    %p119 = scmp.eq.s32.totalorder %s14, 1
    %p120 = por %p118, %p119
    %p122 = scmp.ne.s32.totalorder %s105, %s121
    %p123 = scmp.eq.s32.totalorder %s14, 0
    %p124 = por %p122, %p123
    %p125 = scmp.le.s32.totalorder 1, %s8
    %p126 = scmp.lt.s32.totalorder %s8, 3
    %p127 = pnand %p125, %p126
    %p128 = pneg %p127
    // Predicated region
    $region9: #{hgrn_bit_block.5} parent=5 // pred_check
      _
    $region10: #{hgrn_bit_block.5} parent=5 // pred_check_branch
      %130 = sbr.rel (%p127) target = $region12
    $region11: #{hgrn_bit_block.5} parent=5 // pred_region
      %s131 = ssub.s32 %s8, 1
    $region12: #{hgrn_bit_block.5} parent=5 // pred_fallthru
      _
    %p132 = scmp.lt.s32.totalorder %s8, 2
    // Predicated region
    $region13: #{hgrn_bit_block.5} parent=5 // pred_check
      %p133 = pneg %p132
    $region14: #{hgrn_bit_block.5} parent=5 // pred_check_branch
      %135 = sbr.rel (%p133) target = $region16
    $region15: #{hgrn_bit_block.5} parent=5 // pred_region
      // Predicated region
      $region17: #{hgrn_bit_block.5} parent=15 // pred_check
        %p136 = pneg %p51
      $region18: #{hgrn_bit_block.5} parent=15 // pred_check_branch
        %138 = sbr.rel (%p136) target = $region20
      $region19: #{hgrn_bit_block.5} parent=15 // pred_region
        %p139 = scmp.lt.s32.totalorder %s15, 1
        %s140 = scalar_select %p139, %s15, 1
        %p141 = scmp.lt.s32.totalorder %s17, 0
        %s142 = scalar_select %p141, %s17, 0
        %p143 = scmp.lt.s32.totalorder %s16, 0
        %s144 = scalar_select %p143, %s16, 0
        %s145 = sadd.s32 %s144, %s142
        %s146 = sadd.s32 %s145, %s140
        %s147 = smul.addr %s146, 8
        %s148 = scalar_lea.vmem %s0, %s147
      $region20: #{hgrn_bit_block.5} parent=15 // pred_fallthru
        _
      // Predicated region
      $region21: #{hgrn_bit_block.5} parent=15 // pred_check
        %p149 = pneg %p81
      $region22: #{hgrn_bit_block.5} parent=15 // pred_check_branch
        %151 = sbr.rel (%p149) target = $region24
      $region23: #{hgrn_bit_block.5} parent=15 // pred_region
        %p152 = scmp.lt.s32.totalorder %s15, 1
        %s153 = scalar_select %p152, %s15, 1
        %p154 = scmp.lt.s32.totalorder %s17, 0
        %s155 = scalar_select %p154, %s17, 0
        %p156 = scmp.lt.s32.totalorder %s16, 0
        %s157 = scalar_select %p156, %s16, 0
        %s158 = sadd.s32 %s157, %s155
        %s159 = sadd.s32 %s158, %s153
        %s160 = smul.addr %s159, 8
        %s161 = scalar_lea.vmem %s1, %s160
      $region24: #{hgrn_bit_block.5} parent=15 // pred_fallthru
        _
    $region16: #{hgrn_bit_block.5} parent=5 // pred_fallthru
      _
    %p162 = scmp.le.s32.totalorder 1, %s8
    %p163 = scmp.lt.s32.totalorder %s8, 3
    %p164 = pnand %p162, %p163
    %p165 = pneg %p164
    // Predicated region
    $region25: #{hgrn_bit_block.5} parent=5 // pred_check
      _
    $region26: #{hgrn_bit_block.5} parent=5 // pred_check_branch
      %167 = sbr.rel (%p164) target = $region28
    $region27: #{hgrn_bit_block.5} parent=5 // pred_region
      %s168 = ssub.s32 %s8, 1
      %p169 = scmp.lt.s32.totalorder %s18, 1
      %s170 = scalar_select %p169, %s18, 1
      %p171 = scmp.lt.s32.totalorder %s20, 0
      %s172 = scalar_select %p171, %s20, 0
      %p173 = scmp.lt.s32.totalorder %s19, 0
      %s174 = scalar_select %p173, %s19, 0
      %s175 = sadd.s32 %s174, %s172
      %s176 = sadd.s32 %s175, %s170
      %s177 = smul.addr %s176, 8
      %s178 = scalar_lea.vmem %s0, %s177
      %p179 = pneg %p57
      %p180 = pneg %p54
      %p181 = scmp.lt.s32.totalorder %s18, 1
      %s182 = scalar_select %p181, %s18, 1
      %p183 = scmp.lt.s32.totalorder %s20, 0
      %s184 = scalar_select %p183, %s20, 0
      %p185 = scmp.lt.s32.totalorder %s19, 0
      %s186 = scalar_select %p185, %s19, 0
      %s187 = sadd.s32 %s186, %s184
      %s188 = sadd.s32 %s187, %s182
      %s189 = smul.addr %s188, 8
      %s190 = scalar_lea.vmem %s1, %s189
      %p191 = pneg %p87
      %p192 = pneg %p84
      %p193 = pneg %p117
      %p194 = pneg %p114
      %p195 = scmp.lt.s32.totalorder %s18, 1
      %s196 = scalar_select %p195, %s18, 1
      %p197 = scmp.lt.s32.totalorder %s20, 0
      %s198 = scalar_select %p197, %s20, 0
      %p199 = scmp.lt.s32.totalorder %s19, 0
      %s200 = scalar_select %p199, %s19, 0
      %s201 = sadd.s32 %s200, %s198
      %s202 = sadd.s32 %s201, %s196
      %s203 = smul.addr %s202, 8
      %s204 = scalar_lea.vmem %s2, %s203
      %p205 = scmp.lt.s32.totalorder %s18, 1
      %s206 = scalar_select %p205, %s18, 1
      %p207 = scmp.lt.s32.totalorder %s20, 0
      %s208 = scalar_select %p207, %s20, 0
      %p209 = scmp.lt.s32.totalorder %s19, 0
      %s210 = scalar_select %p209, %s19, 0
      %s211 = sadd.s32 %s210, %s208
      %s212 = sadd.s32 %s211, %s206
      %s213 = smul.addr %s212, 8
      %s214 = scalar_lea.vmem %s0, %s213
      %p215 = scmp.lt.s32.totalorder %s18, 1
      %s216 = scalar_select %p215, %s18, 1
      %p217 = scmp.lt.s32.totalorder %s20, 0
      %s218 = scalar_select %p217, %s20, 0
      %p219 = scmp.lt.s32.totalorder %s19, 0
      %s220 = scalar_select %p219, %s19, 0
      %s221 = sadd.s32 %s220, %s218
      %s222 = sadd.s32 %s221, %s216
      %s223 = smul.addr %s222, 8
      %s224 = scalar_lea.vmem %s1, %s223
      %p225 = scmp.lt.s32.totalorder %s18, 1
      %s226 = scalar_select %p225, %s18, 1
      %p227 = scmp.lt.s32.totalorder %s20, 0
      %s228 = scalar_select %p227, %s20, 0
      %p229 = scmp.lt.s32.totalorder %s19, 0
      %s230 = scalar_select %p229, %s19, 0
      %s231 = sadd.s32 %s230, %s228
      %s232 = sadd.s32 %s231, %s226
      %s233 = smul.addr %s232, 8
      %s234 = scalar_lea.vmem %s2, %s233
      %p235 = scmp.eq.s32.totalorder %s20, 0
      // Predicated region
      $region29: #{hgrn_bit_block.5} parent=27 // pred_check
        %p236 = pneg %p235
      $region30: #{hgrn_bit_block.5} parent=27 // pred_check_branch
        %238 = sbr.rel (%p236) target = $region32
      $region31: #{hgrn_bit_block.5} parent=27 // pred_region
        %vm239 = vcmask 253952
        %240 = vst.msk [vmem:[#allocation2] sm:$0x1] %vm239, 0.0
      $region32: #{hgrn_bit_block.5} parent=27 // pred_fallthru
        _
      %v241 = vlaneseq
      %v242 = vshrl.u32 %v241, 7
      %vm243 = vcmp.ge.s32.totalorder %v242, 1
      %vm244 = vcmp.ge.s32.totalorder %v242, 2
      %vm245 = vcmp.ge.s32.totalorder %v242, 4
      %v246 = vld [vmem:[#allocation2] sm:$0x1]
      %v247 = vld [vmem:[%s224] sm:$0xff]
      %v248 = vld [vmem:[%s214] sm:$0xff]
      %v249 = vrot.slane %v247, 7
      %v250 = vsel %vm243, %v249, 1.0
      %v251 = vrot.slane %v248, 7
      %v252 = vsel %vm243, %v251, 0.0
      %v253 = vmul.f32 %v247, %v252
      %v254 = vadd.f32 %v253, %v248
      %v255 = vmul.f32 %v247, %v250
      %v256 = vrot.slane %v255, 6
      %v257 = vsel %vm244, %v256, 1.0
      %v258 = vrot.slane %v254, 6
      %v259 = vsel %vm244, %v258, 0.0
      %v260 = vmul.f32 %v255, %v259
      %v261 = vadd.f32 %v260, %v254
      %v262 = vmul.f32 %v255, %v257
      %v263 = vrot.slane %v262, 4
      %v264 = vsel %vm245, %v263, 1.0
      %v265 = vrot.slane %v261, 4
      %v266 = vsel %vm245, %v265, 0.0
      %v267 = vmul.f32 %v262, %v266
      %v268 = vadd.f32 %v267, %v261
      %v269 = vmul.f32 %v262, %v264
      %v271 = vlaneseq
      %v272 = vshrl.u32 %v271, 7
      %v273 = vsub.s32 0, %v272
      %v274 = vrot.slane %v246, %v273
      %v276 = vmul.f32 %v269, %v274
      %v277 = vadd.f32 %v276, %v268
      %vm278 = vcmask 261120
      %279 = vst.msk [vmem:[%s234] sm:$0xff] %vm278, %v277
      %vm280 = vcmask 261127
      %281 = vst.msk [vmem:[#allocation2 - $0x7] sm:$0x80] %vm280, %v277
      %p282 = scmp.lt.s32.totalorder %s18, 1
      %s283 = scalar_select %p282, %s18, 1
      %p284 = scmp.lt.s32.totalorder %s20, 0
      %s285 = scalar_select %p284, %s20, 0
      %p286 = scmp.lt.s32.totalorder %s19, 0
      %s287 = scalar_select %p286, %s19, 0
      %s288 = sadd.s32 %s287, %s285
      %s289 = sadd.s32 %s288, %s283
      %s290 = smul.addr %s289, 8
      %s291 = scalar_lea.vmem %s2, %s290
      // Predicated region
      $region33: #{hgrn_bit_block.5} parent=27 // pred_check
        %p292 = pneg %p114
      $region34: #{hgrn_bit_block.5} parent=27 // pred_check_branch
        %294 = sbr.rel (%p292) target = $region36
      $region35: #{hgrn_bit_block.5} parent=27 // pred_region
        _
      $region36: #{hgrn_bit_block.5} parent=27 // pred_fallthru
        _
    $region28: #{hgrn_bit_block.5} parent=5 // pred_fallthru
      _
    %p295 = scmp.le.s32.totalorder 2, %s8
    // Predicated region
    $region37: #{hgrn_bit_block.5} parent=5 // pred_check
      %p296 = pneg %p295
    $region38: #{hgrn_bit_block.5} parent=5 // pred_check_branch
      %298 = sbr.rel (%p296) target = $region40
    $region39: #{hgrn_bit_block.5} parent=5 // pred_region
      %s299 = ssub.s32 %s8, 2
      // Predicated region
      $region41: #{hgrn_bit_block.5} parent=39 // pred_check
        %p300 = pneg %p120
      $region42: #{hgrn_bit_block.5} parent=39 // pred_check_branch
        %302 = sbr.rel (%p300) target = $region44
      $region43: #{hgrn_bit_block.5} parent=39 // pred_region
        %p303 = scmp.lt.s32.totalorder %s21, 1
        %s304 = scalar_select %p303, %s21, 1
        %p305 = scmp.lt.s32.totalorder %s23, 0
        %s306 = scalar_select %p305, %s23, 0
        %p307 = scmp.lt.s32.totalorder %s22, 0
        %s308 = scalar_select %p307, %s22, 0
        %s309 = sadd.s32 %s308, %s306
        %s310 = sadd.s32 %s309, %s304
        %s311 = smul.addr %s310, 8
        %s312 = scalar_lea.vmem %s2, %s311
      $region44: #{hgrn_bit_block.5} parent=39 // pred_fallthru
        _
    $region40: #{hgrn_bit_block.5} parent=5 // pred_fallthru
      _
  $region6: #{hgrn_bit_block.5} parent=0 // loop_footer
    %s12 = sadd.s32 1, %s8
  $region7: #{hgrn_bit_block.5} parent=0 // loop_footer_branch
    %7 = sbr.rel target = $region3
  $region8: #{hgrn_bit_block.5} parent=0 // loop_exit
    _

// kernel: hgrn_bit_block.6
$region0: #{hgrn_bit_block.6}
  #allocation0 [shape = 'u32[]', space=smem, size = 0x4, offset = 0x4, fixed_abs, tag = 'smem constant byte address 0x4 - core index']
  #allocation1 [shape = 'u32[144,128]{1,0:T(1,128)}', space=vmem, size = 0x12000, scoped, tag = 'internal scratch']
  #allocation2 [shape = 'f32[1,1]{1,0:T(1,128)S(6)}', space=smem, size = 0x200, scoped, tag = 'scoped memory for hgrn_bit_block.6']
  %s0 = inlined_call_operand.vmem [shape: f32[16,32], index: 0, kind: input, shape index: {}]
  %s1 = inlined_call_operand.vmem [shape: f32[16,32], index: 1, kind: input, shape index: {}]
  %s2 = inlined_call_operand.vmem [shape: f32[16,32], index: 2, kind: input, shape index: {}]
  %s3 = inlined_call_operand.vmem [shape: f32[1,32], index: 3, kind: input, shape index: {}]
  %s4 = inlined_call_operand.vmem [shape: f32[1,32], index: 4, kind: input, shape index: {}]
  %s5 = inlined_call_operand.vmem [shape: s8[32,32], index: 5, kind: input, shape index: {}]
  %s6 = inlined_call_operand.vmem [shape: f32[1,32], index: 6, kind: input, shape index: {}]
  %s7 = inlined_call_operand.<no memory space> [shape: f32[1,1], index: 7, kind: input, shape index: {}]
  %s8 = inlined_call_operand.vmem [shape: f32[16,32], index: 8, kind: output, shape index: {0}]
  %s9 = inlined_call_operand.vmem [shape: f32[16,32], index: 9, kind: output, shape index: {1}]
  %10 = xla_tuple %s8, %s9
  %s11 = sld [smem:[#allocation0]]
  $region50: #{hgrn_bit_block.6} parent=0
    _
  %s13 = ssub.s32 1, %s11
  %s14 = scalar_select 0, %s13, %s11
  %15 = sst [smem:[#allocation2]] %s7
  // Predicated region
  $region2: #{hgrn_bit_block.6} parent=0 // pred_check
    _
  $region3: #{hgrn_bit_block.6} parent=0 // pred_check_branch
    %17 = sbr.rel (0) target = $region5
  $region4: #{hgrn_bit_block.6} parent=0 // pred_region
    _
  $region5: #{hgrn_bit_block.6} parent=0 // pred_fallthru
    _
  // Predicated region
  $region6: #{hgrn_bit_block.6} parent=0 // pred_check
    _
  $region7: #{hgrn_bit_block.6} parent=0 // pred_check_branch
    %19 = sbr.rel (0) target = $region9
  $region8: #{hgrn_bit_block.6} parent=0 // pred_region
    _
  $region9: #{hgrn_bit_block.6} parent=0 // pred_fallthru
    _
  // Predicated region
  $region10: #{hgrn_bit_block.6} parent=0 // pred_check
    _
  $region11: #{hgrn_bit_block.6} parent=0 // pred_check_branch
    %21 = sbr.rel (0) target = $region13
  $region12: #{hgrn_bit_block.6} parent=0 // pred_region
    _
  $region13: #{hgrn_bit_block.6} parent=0 // pred_fallthru
    _
  // Predicated region
  $region14: #{hgrn_bit_block.6} parent=0 // pred_check
    _
  $region15: #{hgrn_bit_block.6} parent=0 // pred_check_branch
    %23 = sbr.rel (0) target = $region17
  $region16: #{hgrn_bit_block.6} parent=0 // pred_region
    _
  $region17: #{hgrn_bit_block.6} parent=0 // pred_fallthru
    _
  // Predicated region
  $region18: #{hgrn_bit_block.6} parent=0 // pred_check
    _
  $region19: #{hgrn_bit_block.6} parent=0 // pred_check_branch
    %25 = sbr.rel (0) target = $region21
  $region20: #{hgrn_bit_block.6} parent=0 // pred_region
    _
  $region21: #{hgrn_bit_block.6} parent=0 // pred_fallthru
    _
  // Predicated region
  $region22: #{hgrn_bit_block.6} parent=0 // pred_check
    _
  $region23: #{hgrn_bit_block.6} parent=0 // pred_check_branch
    %27 = sbr.rel (0) target = $region25
  $region24: #{hgrn_bit_block.6} parent=0 // pred_region
    _
  $region25: #{hgrn_bit_block.6} parent=0 // pred_fallthru
    _
  // Predicated region
  $region26: #{hgrn_bit_block.6} parent=0 // pred_check
    _
  $region27: #{hgrn_bit_block.6} parent=0 // pred_check_branch
    %29 = sbr.rel (0) target = $region29
  $region28: #{hgrn_bit_block.6} parent=0 // pred_region
    _
  $region29: #{hgrn_bit_block.6} parent=0 // pred_fallthru
    _
  // Predicated region
  $region30: #{hgrn_bit_block.6} parent=0 // pred_check
    _
  $region31: #{hgrn_bit_block.6} parent=0 // pred_check_branch
    %31 = sbr.rel (0) target = $region33
  $region32: #{hgrn_bit_block.6} parent=0 // pred_region
    _
  $region33: #{hgrn_bit_block.6} parent=0 // pred_fallthru
    _
  %v33 = vld [vmem:[%s0] sm:$0xff]
  %v34 = vld [vmem:[%s0 + $0x8] sm:$0xff]
  %v35 = vld [vmem:[%s1] sm:$0xff]
  %v36 = vld [vmem:[%s1 + $0x8] sm:$0xff]
  %v37 = vmul.f32 %v33, %v33
  %v38 = vmul.f32 %v34, %v34
  %vm39 = vcmask 261120
  %v40 = vsel %vm39, %v37, 0.0
  %41 = vadd.xlane.f32.xlu0 %v40
  %v42 = vpop.xlane.xlu0 %41
  %v43 = vsel %vm39, %v38, 0.0
  %44 = vadd.xlane.f32.xlu0 %v43
  %v45 = vpop.xlane.xlu0 %44
  %v46 = vrcp.pop 32.0
  %v47 = vmul.f32 %v42, %v46
  %v48 = vmul.f32 %v45, %v46
  %v49 = vadd.f32 %v47, 1e-06
  %v50 = vadd.f32 %v48, 1e-06
  %v51 = vrsqrt.pop %v49
  %v52 = vrsqrt.pop %v50
  %v53 = vmul.f32 %v33, %v51
  %v54 = vmul.f32 %v34, %v52
  %v55 = vld [vmem:[%s3] sm:$0x1]
  %v57 = vlaneseq
  %v58 = vshrl.u32 %v57, 7
  %v59 = vsub.s32 0, %v58
  %v60 = vrot.slane %v55, %v59
  %v62 = vmul.f32 %v53, %v60
  %v63 = vmul.f32 %v54, %v60
  %v64 = vxor.u32 %v35, 2147483648
  %v65 = vxor.u32 %v36, 2147483648
  %v66 = vmul.f32 %v64, 1.442695
  %v67 = vpow.pop %v66
  %v68 = vmul.f32 %v65, 1.442695
  %v69 = vpow.pop %v68
  %v70 = vadd.f32 %v67, 1.0
  %v71 = vadd.f32 %v69, 1.0
  %v72 = vrcp.pop %v70
  %v73 = vmul.f32 1.0, %v72
  %v74 = vrcp.pop %v71
  %v75 = vmul.f32 1.0, %v74
  %v76 = vmul.f32 %v35, %v73
  %v77 = vmul.f32 %v36, %v75
  %v78 = vmul.f32 %v62, %v76
  %v79 = vmul.f32 %v63, %v77
  %v80 = vmul.f32 %v78, %v78
  %v81 = vmul.f32 %v79, %v79
  %v82 = vsel %vm39, %v80, 0.0
  %83 = vadd.xlane.f32.xlu0 %v82
  %v84 = vpop.xlane.xlu0 %83
  %v85 = vsel %vm39, %v81, 0.0
  %86 = vadd.xlane.f32.xlu0 %v85
  %v87 = vpop.xlane.xlu0 %86
  %v88 = vmul.f32 %v84, %v46
  %v89 = vmul.f32 %v87, %v46
  %v90 = vadd.f32 %v88, 1e-08
  %v91 = vadd.f32 %v89, 1e-08
  %v92 = vrsqrt.pop %v90
  %v93 = vrsqrt.pop %v91
  %v94 = vmul.f32 %v78, %v92
  %v95 = vmul.f32 %v79, %v93
  %v96 = vld [vmem:[%s4] sm:$0x1]
  %v98 = vlaneseq
  %v99 = vshrl.u32 %v98, 7
  %v100 = vsub.s32 0, %v99
  %v101 = vrot.slane %v96, %v100
  %v103 = vmul.f32 %v94, %v101
  %v104 = vmul.f32 %v95, %v101
  %v105 = vand.u32 2147483647, %v103
  %v106 = vand.u32 2147483647, %v104
  %v107 = vsel %vm39, %v105, -inf
  %108 = vmax.xlane.f32.xlu0 %v107
  %v109 = vpop.xlane.xlu0 %108
  %v110 = vsel %vm39, %v106, -inf
  %111 = vmax.xlane.f32.xlu0 %v110
  %v112 = vpop.xlane.xlu0 %111
  %v113 = vmax.f32 %v109, 1e-05
  %v114 = vmax.f32 %v112, 1e-05
  %v115 = vrcp.pop %v113
  %v116 = vmul.f32 127.0, %v115
  %v117 = vrcp.pop %v114
  %v118 = vmul.f32 127.0, %v117
  %v119 = vmul.f32 %v103, %v116
  %v120 = vmul.f32 %v104, %v118
  %v121 = vround.ne.pseudo %v119
  %v122 = vround.ne.pseudo %v120
  %v123 = vmax.f32 %v121, -128.0
  %v124 = vmax.f32 %v122, -128.0
  %v125 = vmin.f32 %v123, 127.0
  %v126 = vmin.f32 %v124, 127.0
  %v127 = vpack.c.bf16 %v126, %v125
  %v128 = vmul.f32 %v113, 0.007874016
  %v129 = vmul.f32 %v114, 0.007874016
  %v130 = vld [vmem:[%s5] sm:$0xff]
  %v131 = vunpack.c.l.s8.bf16 %v130
  %v132 = vunpack.c.h.s8.bf16 %v130
  %v134 = vsel %vm39, %v127, 0
  %136 = vmatprep.subr.bf16.mxu0 0
  %137 = vmatpush1.bf16.msra.mxu0 %v131
  %138 = vmatprep.subr.bf16.mxu0 0
  %139 = vmatpush1.bf16.msra.mxu0 %v132
  %140 = vmatprep.subr.bf16.mxu0 0
  %141 = vmatpush1.bf16.msra.mxu0 0
  %142 = vmatprep.subr.bf16.mxu0 0
  %143 = vmatpush1.bf16.msra.mxu0 0
  %144 = vmatprep.subr.bf16.mxu0 0
  %145 = vmatpush1.bf16.msra.mxu0 0
  %146 = vmatprep.subr.bf16.mxu0 0
  %147 = vmatpush1.bf16.msra.mxu0 0
  %148 = vmatprep.subr.bf16.mxu0 0
  %149 = vmatpush1.bf16.msra.mxu0 0
  %150 = vmatprep.subr.bf16.mxu0 0
  %151 = vmatpush1.bf16.msra.mxu0 0
  %152 = vmatprep.subr.bf16.mxu0 0
  %153 = vmatpush1.bf16.msra.mxu0 0
  %154 = vmatprep.subr.bf16.mxu0 0
  %155 = vmatpush1.bf16.msra.mxu0 0
  %156 = vmatprep.subr.bf16.mxu0 0
  %157 = vmatpush1.bf16.msra.mxu0 0
  %158 = vmatprep.subr.bf16.mxu0 0
  %159 = vmatpush1.bf16.msra.mxu0 0
  %160 = vmatprep.subr.bf16.mxu0 0
  %161 = vmatpush1.bf16.msra.mxu0 0
  %162 = vmatprep.subr.bf16.mxu0 0
  %163 = vmatpush1.bf16.msra.mxu0 0
  %164 = vmatprep.subr.bf16.mxu0 0
  %165 = vmatpush1.bf16.msra.mxu0 0
  %166 = vmatprep.subr.bf16.mxu0 0
  %167 = vmatpush1.bf16.msra.mxu0 0
  %168 = vmatprep.mubr.bf16.mxu0 0
  %169 = vmatmul.mubr.bf16.gmra.mrb[0].mxu0 %v134
  %v170 = vpop.f32.mrb[0].mxu0
  %v171 = vadd.f32 0.0, %v170
  %v172 = vpop.f32.mrb[0].mxu0
  %v173 = vpop.f32.mrb[0].mxu0
  %v174 = vadd.f32 0.0, %v173
  %v175 = vpop.f32.mrb[0].mxu0
  %176 = vdwg.mxu0
  %s177 = sld [smem:[#allocation2]]
  %v178 = vstv %s177
  %v179 = vmul.f32 %v128, %v178
  %v180 = vmul.f32 %v129, %v178
  %v181 = vmul.f32 %v171, %v179
  %v182 = vmul.f32 %v174, %v180
  %v183 = vld [vmem:[%s2] sm:$0xff]
  %v184 = vld [vmem:[%s2 + $0x8] sm:$0xff]
  %v185 = vadd.f32 %v181, %v183
  %v186 = vadd.f32 %v182, %v184
  %187 = vst.msk [vmem:[%s8] sm:$0xff] %vm39, %v185
  %188 = vst.msk [vmem:[%s8 + $0x8] sm:$0xff] %vm39, %v186
  %v189 = vmul.f32 %v185, %v185
  %v190 = vmul.f32 %v186, %v186
  %v191 = vsel %vm39, %v189, 0.0
  %192 = vadd.xlane.f32.xlu0 %v191
  %v193 = vpop.xlane.xlu0 %192
  %v194 = vsel %vm39, %v190, 0.0
  %195 = vadd.xlane.f32.xlu0 %v194
  %v196 = vpop.xlane.xlu0 %195
  %v197 = vmul.f32 %v193, %v46
  %v198 = vmul.f32 %v196, %v46
  %v199 = vadd.f32 %v197, 1e-06
  %v200 = vadd.f32 %v198, 1e-06
  %v201 = vrsqrt.pop %v199
  %v202 = vrsqrt.pop %v200
  %v203 = vmul.f32 %v185, %v201
  %v204 = vmul.f32 %v186, %v202
  %v205 = vld [vmem:[%s6] sm:$0x1]
  %v207 = vlaneseq
  %v208 = vshrl.u32 %v207, 7
  %v209 = vsub.s32 0, %v208
  %v210 = vrot.slane %v205, %v209
  %v212 = vmul.f32 %v203, %v210
  %v213 = vmul.f32 %v204, %v210
  %214 = vst.msk [vmem:[%s9] sm:$0xff] %vm39, %v212
  %215 = vst.msk [vmem:[%s9 + $0x8] sm:$0xff] %vm39, %v213
  // Predicated region
  $region34: #{hgrn_bit_block.6} parent=0 // pred_check
    _
  $region35: #{hgrn_bit_block.6} parent=0 // pred_check_branch
    %217 = sbr.rel (0) target = $region37
  $region36: #{hgrn_bit_block.6} parent=0 // pred_region
    _
  $region37: #{hgrn_bit_block.6} parent=0 // pred_fallthru
    _
  // Predicated region
  $region38: #{hgrn_bit_block.6} parent=0 // pred_check
    _
  $region39: #{hgrn_bit_block.6} parent=0 // pred_check_branch
    %219 = sbr.rel (0) target = $region41
  $region40: #{hgrn_bit_block.6} parent=0 // pred_region
    _
  $region41: #{hgrn_bit_block.6} parent=0 // pred_fallthru
    _
  // Predicated region
  $region42: #{hgrn_bit_block.6} parent=0 // pred_check
    _
  $region43: #{hgrn_bit_block.6} parent=0 // pred_check_branch
    %221 = sbr.rel (0) target = $region45
  $region44: #{hgrn_bit_block.6} parent=0 // pred_region
    _
  $region45: #{hgrn_bit_block.6} parent=0 // pred_fallthru
    _
  // Predicated region
  $region46: #{hgrn_bit_block.6} parent=0 // pred_check
    _
  $region47: #{hgrn_bit_block.6} parent=0 // pred_check_branch
    %223 = sbr.rel (0) target = $region49
  $region48: #{hgrn_bit_block.6} parent=0 // pred_region
    _
  $region49: #{hgrn_bit_block.6} parent=0 // pred_fallthru
    _

// kernel: hgrn_bit_block.4
$region0: #{hgrn_bit_block.4}
  #allocation0 [shape = 'u32[]', space=smem, size = 0x4, offset = 0x4, fixed_abs, tag = 'smem constant byte address 0x4 - core index']
  #allocation1 [shape = 'u32[144,128]{1,0:T(1,128)}', space=vmem, size = 0x12000, scoped, tag = 'internal scratch']
  %s0 = inlined_call_operand.vmem [shape: f32[16,32], index: 0, kind: input, shape index: {}]
  %s1 = inlined_call_operand.vmem [shape: f32[1,32], index: 1, kind: input, shape index: {}]
  %s2 = inlined_call_operand.vmem [shape: f32[1,32], index: 2, kind: input, shape index: {}]
  %s3 = inlined_call_operand.vmem [shape: f32[1,32], index: 3, kind: input, shape index: {}]
  %s4 = inlined_call_operand.vmem [shape: f32[1,32], index: 4, kind: input, shape index: {}]
  %s5 = inlined_call_operand.vmem [shape: s8[32,32], index: 5, kind: input, shape index: {}]
  %s6 = inlined_call_operand.vmem [shape: s8[32,32], index: 6, kind: input, shape index: {}]
  %s7 = inlined_call_operand.vmem [shape: s8[32,32], index: 7, kind: input, shape index: {}]
  %s8 = inlined_call_operand.vmem [shape: f32[1,3], index: 8, kind: input, shape index: {}]
  %s9 = inlined_call_operand.vmem [shape: f32[16,32], index: 9, kind: output, shape index: {0}]
  %s10 = inlined_call_operand.vmem [shape: f32[16,32], index: 10, kind: output, shape index: {1}]
  %s11 = inlined_call_operand.vmem [shape: f32[16,32], index: 11, kind: output, shape index: {2}]
  %12 = xla_tuple %s9, %s10, %s11
  %s13 = sld [smem:[#allocation0]]
  $region66: #{hgrn_bit_block.4} parent=0
    _
  %s15 = ssub.s32 1, %s13
  %s16 = scalar_select 0, %s15, %s13
  $region1: #{hgrn_bit_block.4} parent=0
    #allocation2 [shape = 'u8[512]{0}', space=smem, size = 0x200, scoped, tag = 'input window, operand 8, single buffered']
    #allocation3 [shape = 's32[1]{0}', space=sflag, size = 0x4, scoped, tag = 'scoped memory for hgrn_bit_block.4']
    %17 = vsyncpa [#allocation3], 0
    // Predicated region
    $region2: #{hgrn_bit_block.4} parent=1 // pred_check
      _
    $region3: #{hgrn_bit_block.4} parent=1 // pred_check_branch
      %19 = sbr.rel (0) target = $region5
    $region4: #{hgrn_bit_block.4} parent=1 // pred_region
      _
    $region5: #{hgrn_bit_block.4} parent=1 // pred_fallthru
      _
    // Predicated region
    $region6: #{hgrn_bit_block.4} parent=1 // pred_check
      _
    $region7: #{hgrn_bit_block.4} parent=1 // pred_check_branch
      %21 = sbr.rel (0) target = $region9
    $region8: #{hgrn_bit_block.4} parent=1 // pred_region
      _
    $region9: #{hgrn_bit_block.4} parent=1 // pred_fallthru
      _
    // Predicated region
    $region10: #{hgrn_bit_block.4} parent=1 // pred_check
      _
    $region11: #{hgrn_bit_block.4} parent=1 // pred_check_branch
      %23 = sbr.rel (0) target = $region13
    $region12: #{hgrn_bit_block.4} parent=1 // pred_region
      _
    $region13: #{hgrn_bit_block.4} parent=1 // pred_fallthru
      _
    // Predicated region
    $region14: #{hgrn_bit_block.4} parent=1 // pred_check
      _
    $region15: #{hgrn_bit_block.4} parent=1 // pred_check_branch
      %25 = sbr.rel (0) target = $region17
    $region16: #{hgrn_bit_block.4} parent=1 // pred_region
      _
    $region17: #{hgrn_bit_block.4} parent=1 // pred_fallthru
      _
    // Predicated region
    $region18: #{hgrn_bit_block.4} parent=1 // pred_check
      _
    $region19: #{hgrn_bit_block.4} parent=1 // pred_check_branch
      %27 = sbr.rel (0) target = $region21
    $region20: #{hgrn_bit_block.4} parent=1 // pred_region
      _
    $region21: #{hgrn_bit_block.4} parent=1 // pred_fallthru
      _
    // Predicated region
    $region22: #{hgrn_bit_block.4} parent=1 // pred_check
      _
    $region23: #{hgrn_bit_block.4} parent=1 // pred_check_branch
      %29 = sbr.rel (0) target = $region25
    $region24: #{hgrn_bit_block.4} parent=1 // pred_region
      _
    $region25: #{hgrn_bit_block.4} parent=1 // pred_fallthru
      _
    // Predicated region
    $region26: #{hgrn_bit_block.4} parent=1 // pred_check
      _
    $region27: #{hgrn_bit_block.4} parent=1 // pred_check_branch
      %31 = sbr.rel (0) target = $region29
    $region28: #{hgrn_bit_block.4} parent=1 // pred_region
      _
    $region29: #{hgrn_bit_block.4} parent=1 // pred_fallthru
      _
    // Predicated region
    $region30: #{hgrn_bit_block.4} parent=1 // pred_check
      _
    $region31: #{hgrn_bit_block.4} parent=1 // pred_check_branch
      %33 = sbr.rel (0) target = $region33
    $region32: #{hgrn_bit_block.4} parent=1 // pred_region
      _
    $region33: #{hgrn_bit_block.4} parent=1 // pred_fallthru
      _
    // Predicated region
    $region34: #{hgrn_bit_block.4} parent=1 // pred_check
      _
    $region35: #{hgrn_bit_block.4} parent=1 // pred_check_branch
      %35 = sbr.rel (0) target = $region37
    $region36: #{hgrn_bit_block.4} parent=1 // pred_region
      %s37 = ssub.s32 16, 16
      %38 = vsyncadd [#allocation3], %s37
      %s40 = sshll.u32 %s8, 4
      %s41 = int_to_ptr.vmem [resolvable:$true] %s40
      %43 = dma.vmem_to_smem %s41, 16, [#allocation2], [#allocation3]
    $region37: #{hgrn_bit_block.4} parent=1 // pred_fallthru
      _
    // Predicated region
    $region38: #{hgrn_bit_block.4} parent=1 // pred_check
      _
    $region39: #{hgrn_bit_block.4} parent=1 // pred_check_branch
      %45 = sbr.rel (0) target = $region41
    $region40: #{hgrn_bit_block.4} parent=1 // pred_region
      %46 = dma.done [#allocation3], 16
    $region41: #{hgrn_bit_block.4} parent=1 // pred_fallthru
      _
    %47 = sfence
    %v49 = vld [vmem:[%s0] sm:$0xff]
    %v50 = vld [vmem:[%s0 + $0x8] sm:$0xff]
    %v51 = vmul.f32 %v49, %v49
    %v52 = vmul.f32 %v50, %v50
    %vm53 = vcmask 261120
    %v54 = vsel %vm53, %v51, 0.0
    %55 = vadd.xlane.f32.xlu0 %v54
    %v56 = vpop.xlane.xlu0 %55
    %v57 = vsel %vm53, %v52, 0.0
    %58 = vadd.xlane.f32.xlu0 %v57
    %v59 = vpop.xlane.xlu0 %58
    %v60 = vrcp.pop 32.0
    %v61 = vmul.f32 %v56, %v60
    %v62 = vmul.f32 %v59, %v60
    %v63 = vadd.f32 %v61, 1e-06
    %v64 = vadd.f32 %v62, 1e-06
    %v65 = vrsqrt.pop %v63
    %v66 = vrsqrt.pop %v64
    %v67 = vmul.f32 %v49, %v65
    %v68 = vmul.f32 %v50, %v66
    %v69 = vld [vmem:[%s1] sm:$0x1]
    %v71 = vlaneseq
    %v72 = vshrl.u32 %v71, 7
    %v73 = vsub.s32 0, %v72
    %v74 = vrot.slane %v69, %v73
    %v76 = vmul.f32 %v67, %v74
    %v77 = vmul.f32 %v68, %v74
    %v78 = vmul.f32 %v76, %v76
    %v79 = vmul.f32 %v77, %v77
    %v80 = vsel %vm53, %v78, 0.0
    %81 = vadd.xlane.f32.xlu0 %v80
    %v82 = vpop.xlane.xlu0 %81
    %v83 = vsel %vm53, %v79, 0.0
    %84 = vadd.xlane.f32.xlu0 %v83
    %v85 = vpop.xlane.xlu0 %84
    %v86 = vmul.f32 %v82, %v60
    %v87 = vmul.f32 %v85, %v60
    %v88 = vadd.f32 %v86, 1e-08
    %v89 = vadd.f32 %v87, 1e-08
    %v90 = vrsqrt.pop %v88
    %v91 = vrsqrt.pop %v89
    %s92 = sld [smem:[#allocation2]]
    %v93 = vmul.f32 %v76, %v90
    %v94 = vmul.f32 %v77, %v91
    %v95 = vld [vmem:[%s2] sm:$0x1]
    %v97 = vlaneseq
    %v98 = vshrl.u32 %v97, 7
    %v99 = vsub.s32 0, %v98
    %v100 = vrot.slane %v95, %v99
    %v102 = vmul.f32 %v93, %v100
    %v103 = vmul.f32 %v94, %v100
    %v104 = vand.u32 2147483647, %v102
    %v105 = vand.u32 2147483647, %v103
    %v106 = vsel %vm53, %v104, -inf
    %107 = vmax.xlane.f32.xlu0 %v106
    %v108 = vpop.xlane.xlu0 %107
    %v109 = vsel %vm53, %v105, -inf
    %110 = vmax.xlane.f32.xlu0 %v109
    %v111 = vpop.xlane.xlu0 %110
    %v112 = vmax.f32 %v108, 1e-05
    %v113 = vmax.f32 %v111, 1e-05
    %v114 = vrcp.pop %v112
    %v115 = vmul.f32 127.0, %v114
    %v116 = vrcp.pop %v113
    %v117 = vmul.f32 127.0, %v116
    %v118 = vmul.f32 %v102, %v115
    %v119 = vmul.f32 %v103, %v117
    %v120 = vround.ne.pseudo %v118
    %v121 = vround.ne.pseudo %v119
    %v122 = vmax.f32 %v120, -128.0
    %v123 = vmax.f32 %v121, -128.0
    %v124 = vmin.f32 %v122, 127.0
    %v125 = vmin.f32 %v123, 127.0
    %v126 = vpack.c.bf16 %v125, %v124
    %v127 = vmul.f32 %v112, 0.007874016
    %v128 = vmul.f32 %v113, 0.007874016
    %v129 = vld [vmem:[%s5] sm:$0xff]
    %v130 = vunpack.c.l.s8.bf16 %v129
    %v131 = vunpack.c.h.s8.bf16 %v129
    %v133 = vsel %vm53, %v126, 0
    %135 = vmatprep.subr.bf16.mxu0 0
    %136 = vmatpush1.bf16.msra.mxu0 %v130
    %137 = vmatprep.subr.bf16.mxu0 0
    %138 = vmatpush1.bf16.msra.mxu0 %v131
    %139 = vmatprep.subr.bf16.mxu0 0
    %140 = vmatpush1.bf16.msra.mxu0 0
    %141 = vmatprep.subr.bf16.mxu0 0
    %142 = vmatpush1.bf16.msra.mxu0 0
    %143 = vmatprep.subr.bf16.mxu0 0
    %144 = vmatpush1.bf16.msra.mxu0 0
    %145 = vmatprep.subr.bf16.mxu0 0
    %146 = vmatpush1.bf16.msra.mxu0 0
    %147 = vmatprep.subr.bf16.mxu0 0
    %148 = vmatpush1.bf16.msra.mxu0 0
    %149 = vmatprep.subr.bf16.mxu0 0
    %150 = vmatpush1.bf16.msra.mxu0 0
    %151 = vmatprep.subr.bf16.mxu0 0
    %152 = vmatpush1.bf16.msra.mxu0 0
    %153 = vmatprep.subr.bf16.mxu0 0
    %154 = vmatpush1.bf16.msra.mxu0 0
    %155 = vmatprep.subr.bf16.mxu0 0
    %156 = vmatpush1.bf16.msra.mxu0 0
    %157 = vmatprep.subr.bf16.mxu0 0
    %158 = vmatpush1.bf16.msra.mxu0 0
    %159 = vmatprep.subr.bf16.mxu0 0
    %160 = vmatpush1.bf16.msra.mxu0 0
    %161 = vmatprep.subr.bf16.mxu0 0
    %162 = vmatpush1.bf16.msra.mxu0 0
    %163 = vmatprep.subr.bf16.mxu0 0
    %164 = vmatpush1.bf16.msra.mxu0 0
    %165 = vmatprep.subr.bf16.mxu0 0
    %166 = vmatpush1.bf16.msra.mxu0 0
    %167 = vmatprep.mubr.bf16.mxu0 0
    %168 = vmatmul.mubr.bf16.gmra.mrb[0].mxu0 %v133
    %v169 = vpop.f32.mrb[0].mxu0
    %v170 = vadd.f32 0.0, %v169
    %v171 = vpop.f32.mrb[0].mxu0
    %v172 = vpop.f32.mrb[0].mxu0
    %v173 = vadd.f32 0.0, %v172
    %v174 = vpop.f32.mrb[0].mxu0
    %175 = vdwg.mxu0
    %v176 = vstv %s92
    %v177 = vmul.f32 %v127, %v176
    %v178 = vmul.f32 %v128, %v176
    %v179 = vmul.f32 %v170, %v177
    %v180 = vmul.f32 %v173, %v178
    %s181 = sld [smem:[#allocation2 + $0x1]]
    %v182 = vld [vmem:[%s3] sm:$0x1]
    %v184 = vlaneseq
    %v185 = vshrl.u32 %v184, 7
    %v186 = vsub.s32 0, %v185
    %v187 = vrot.slane %v182, %v186
    %v189 = vmul.f32 %v93, %v187
    %v190 = vmul.f32 %v94, %v187
    %v191 = vand.u32 2147483647, %v189
    %v192 = vand.u32 2147483647, %v190
    %v193 = vsel %vm53, %v191, -inf
    %194 = vmax.xlane.f32.xlu0 %v193
    %v195 = vpop.xlane.xlu0 %194
    %v196 = vsel %vm53, %v192, -inf
    %197 = vmax.xlane.f32.xlu0 %v196
    %v198 = vpop.xlane.xlu0 %197
    %v199 = vmax.f32 %v195, 1e-05
    %v200 = vmax.f32 %v198, 1e-05
    %v201 = vrcp.pop %v199
    %v202 = vmul.f32 127.0, %v201
    %v203 = vrcp.pop %v200
    %v204 = vmul.f32 127.0, %v203
    %v205 = vmul.f32 %v189, %v202
    %v206 = vmul.f32 %v190, %v204
    %v207 = vround.ne.pseudo %v205
    %v208 = vround.ne.pseudo %v206
    %v209 = vmax.f32 %v207, -128.0
    %v210 = vmax.f32 %v208, -128.0
    %v211 = vmin.f32 %v209, 127.0
    %v212 = vmin.f32 %v210, 127.0
    %v213 = vpack.c.bf16 %v212, %v211
    %v214 = vmul.f32 %v199, 0.007874016
    %v215 = vmul.f32 %v200, 0.007874016
    %v216 = vld [vmem:[%s6] sm:$0xff]
    %v217 = vunpack.c.l.s8.bf16 %v216
    %v218 = vunpack.c.h.s8.bf16 %v216
    %v220 = vsel %vm53, %v213, 0
    %222 = vmatprep.subr.bf16.mxu0 0
    %223 = vmatpush1.bf16.msra.mxu0 %v217
    %224 = vmatprep.subr.bf16.mxu0 0
    %225 = vmatpush1.bf16.msra.mxu0 %v218
    %226 = vmatprep.subr.bf16.mxu0 0
    %227 = vmatpush1.bf16.msra.mxu0 0
    %228 = vmatprep.subr.bf16.mxu0 0
    %229 = vmatpush1.bf16.msra.mxu0 0
    %230 = vmatprep.subr.bf16.mxu0 0
    %231 = vmatpush1.bf16.msra.mxu0 0
    %232 = vmatprep.subr.bf16.mxu0 0
    %233 = vmatpush1.bf16.msra.mxu0 0
    %234 = vmatprep.subr.bf16.mxu0 0
    %235 = vmatpush1.bf16.msra.mxu0 0
    %236 = vmatprep.subr.bf16.mxu0 0
    %237 = vmatpush1.bf16.msra.mxu0 0
    %238 = vmatprep.subr.bf16.mxu0 0
    %239 = vmatpush1.bf16.msra.mxu0 0
    %240 = vmatprep.subr.bf16.mxu0 0
    %241 = vmatpush1.bf16.msra.mxu0 0
    %242 = vmatprep.subr.bf16.mxu0 0
    %243 = vmatpush1.bf16.msra.mxu0 0
    %244 = vmatprep.subr.bf16.mxu0 0
    %245 = vmatpush1.bf16.msra.mxu0 0
    %246 = vmatprep.subr.bf16.mxu0 0
    %247 = vmatpush1.bf16.msra.mxu0 0
    %248 = vmatprep.subr.bf16.mxu0 0
    %249 = vmatpush1.bf16.msra.mxu0 0
    %250 = vmatprep.subr.bf16.mxu0 0
    %251 = vmatpush1.bf16.msra.mxu0 0
    %252 = vmatprep.subr.bf16.mxu0 0
    %253 = vmatpush1.bf16.msra.mxu0 0
    %254 = vmatprep.mubr.bf16.mxu0 0
    %255 = vmatmul.mubr.bf16.gmra.mrb[0].mxu0 %v220
    %v256 = vpop.f32.mrb[0].mxu0
    %v257 = vadd.f32 0.0, %v256
    %v258 = vpop.f32.mrb[0].mxu0
    %v259 = vpop.f32.mrb[0].mxu0
    %v260 = vadd.f32 0.0, %v259
    %v261 = vpop.f32.mrb[0].mxu0
    %262 = vdwg.mxu0
    %v263 = vstv %s181
    %v264 = vmul.f32 %v214, %v263
    %v265 = vmul.f32 %v215, %v263
    %v266 = vmul.f32 %v257, %v264
    %v267 = vmul.f32 %v260, %v265
    %s268 = sld [smem:[#allocation2 + $0x2]]
    %v269 = vld [vmem:[%s4] sm:$0x1]
    %v271 = vlaneseq
    %v272 = vshrl.u32 %v271, 7
    %v273 = vsub.s32 0, %v272
    %v274 = vrot.slane %v269, %v273
    %v276 = vmul.f32 %v93, %v274
    %v277 = vmul.f32 %v94, %v274
    %v278 = vand.u32 2147483647, %v276
    %v279 = vand.u32 2147483647, %v277
    %v280 = vsel %vm53, %v278, -inf
    %281 = vmax.xlane.f32.xlu0 %v280
    %v282 = vpop.xlane.xlu0 %281
    %v283 = vsel %vm53, %v279, -inf
    %284 = vmax.xlane.f32.xlu0 %v283
    %v285 = vpop.xlane.xlu0 %284
    %v286 = vmax.f32 %v282, 1e-05
    %v287 = vmax.f32 %v285, 1e-05
    %v288 = vrcp.pop %v286
    %v289 = vmul.f32 127.0, %v288
    %v290 = vrcp.pop %v287
    %v291 = vmul.f32 127.0, %v290
    %v292 = vmul.f32 %v276, %v289
    %v293 = vmul.f32 %v277, %v291
    %v294 = vround.ne.pseudo %v292
    %v295 = vround.ne.pseudo %v293
    %v296 = vmax.f32 %v294, -128.0
    %v297 = vmax.f32 %v295, -128.0
    %v298 = vmin.f32 %v296, 127.0
    %v299 = vmin.f32 %v297, 127.0
    %v300 = vpack.c.bf16 %v299, %v298
    %v301 = vmul.f32 %v286, 0.007874016
    %v302 = vmul.f32 %v287, 0.007874016
    %v303 = vld [vmem:[%s7] sm:$0xff]
    %v304 = vunpack.c.l.s8.bf16 %v303
    %v305 = vunpack.c.h.s8.bf16 %v303
    %v307 = vsel %vm53, %v300, 0
    %309 = vmatprep.subr.bf16.mxu0 0
    %310 = vmatpush1.bf16.msra.mxu0 %v304
    %311 = vmatprep.subr.bf16.mxu0 0
    %312 = vmatpush1.bf16.msra.mxu0 %v305
    %313 = vmatprep.subr.bf16.mxu0 0
    %314 = vmatpush1.bf16.msra.mxu0 0
    %315 = vmatprep.subr.bf16.mxu0 0
    %316 = vmatpush1.bf16.msra.mxu0 0
    %317 = vmatprep.subr.bf16.mxu0 0
    %318 = vmatpush1.bf16.msra.mxu0 0
    %319 = vmatprep.subr.bf16.mxu0 0
    %320 = vmatpush1.bf16.msra.mxu0 0
    %321 = vmatprep.subr.bf16.mxu0 0
    %322 = vmatpush1.bf16.msra.mxu0 0
    %323 = vmatprep.subr.bf16.mxu0 0
    %324 = vmatpush1.bf16.msra.mxu0 0
    %325 = vmatprep.subr.bf16.mxu0 0
    %326 = vmatpush1.bf16.msra.mxu0 0
    %327 = vmatprep.subr.bf16.mxu0 0
    %328 = vmatpush1.bf16.msra.mxu0 0
    %329 = vmatprep.subr.bf16.mxu0 0
    %330 = vmatpush1.bf16.msra.mxu0 0
    %331 = vmatprep.subr.bf16.mxu0 0
    %332 = vmatpush1.bf16.msra.mxu0 0
    %333 = vmatprep.subr.bf16.mxu0 0
    %334 = vmatpush1.bf16.msra.mxu0 0
    %335 = vmatprep.subr.bf16.mxu0 0
    %336 = vmatpush1.bf16.msra.mxu0 0
    %337 = vmatprep.subr.bf16.mxu0 0
    %338 = vmatpush1.bf16.msra.mxu0 0
    %339 = vmatprep.subr.bf16.mxu0 0
    %340 = vmatpush1.bf16.msra.mxu0 0
    %341 = vmatprep.mubr.bf16.mxu0 0
    %342 = vmatmul.mubr.bf16.gmra.mrb[0].mxu0 %v307
    %v343 = vpop.f32.mrb[0].mxu0
    %v344 = vadd.f32 0.0, %v343
    %v345 = vpop.f32.mrb[0].mxu0
    %v346 = vpop.f32.mrb[0].mxu0
    %v347 = vadd.f32 0.0, %v346
    %v348 = vpop.f32.mrb[0].mxu0
    %349 = vdwg.mxu0
    %v350 = vstv %s268
    %v351 = vmul.f32 %v301, %v350
    %v352 = vmul.f32 %v302, %v350
    %v353 = vmul.f32 %v344, %v351
    %v354 = vmul.f32 %v347, %v352
    %v355 = vxor.u32 %v266, 2147483648
    %v356 = vxor.u32 %v267, 2147483648
    %v357 = vmul.f32 %v355, 1.442695
    %v358 = vpow.pop %v357
    %v359 = vmul.f32 %v356, 1.442695
    %v360 = vpow.pop %v359
    %v361 = vadd.f32 %v358, 1.0
    %v362 = vadd.f32 %v360, 1.0
    %v363 = vrcp.pop %v361
    %v364 = vmul.f32 1.0, %v363
    %v365 = vrcp.pop %v362
    %v366 = vmul.f32 1.0, %v365
    %v367 = vxor.u32 %v179, 2147483648
    %v368 = vxor.u32 %v180, 2147483648
    %v369 = vmul.f32 %v367, 1.442695
    %v370 = vpow.pop %v369
    %v371 = vmul.f32 %v368, 1.442695
    %v372 = vpow.pop %v371
    %v373 = vadd.f32 %v370, 1.0
    %v374 = vadd.f32 %v372, 1.0
    %v375 = vrcp.pop %v373
    %v376 = vmul.f32 1.0, %v375
    %v377 = vrcp.pop %v374
    %v378 = vmul.f32 1.0, %v377
    %v379 = vmul.f32 %v179, %v376
    %v380 = vmul.f32 %v180, %v378
    %v381 = vsub.f32 1.0, %v364
    %v382 = vsub.f32 1.0, %v366
    %v383 = vmul.f32 %v379, %v381
    %v384 = vmul.f32 %v380, %v382
    %385 = vst.msk [vmem:[%s9] sm:$0xff] %vm53, %v383
    %386 = vst.msk [vmem:[%s9 + $0x8] sm:$0xff] %vm53, %v384
    %387 = vst.msk [vmem:[%s10] sm:$0xff] %vm53, %v364
    %388 = vst.msk [vmem:[%s10 + $0x8] sm:$0xff] %vm53, %v366
    %389 = vst.msk [vmem:[%s11] sm:$0xff] %vm53, %v353
    %390 = vst.msk [vmem:[%s11 + $0x8] sm:$0xff] %vm53, %v354
    // Predicated region
    $region42: #{hgrn_bit_block.4} parent=1 // pred_check
      _
    $region43: #{hgrn_bit_block.4} parent=1 // pred_check_branch
      %392 = sbr.rel (0) target = $region45
    $region44: #{hgrn_bit_block.4} parent=1 // pred_region
      _
    $region45: #{hgrn_bit_block.4} parent=1 // pred_fallthru
      _
    // Predicated region
    $region46: #{hgrn_bit_block.4} parent=1 // pred_check
      _
    $region47: #{hgrn_bit_block.4} parent=1 // pred_check_branch
      %394 = sbr.rel (0) target = $region49
    $region48: #{hgrn_bit_block.4} parent=1 // pred_region
      _
    $region49: #{hgrn_bit_block.4} parent=1 // pred_fallthru
      _
    // Predicated region
    $region50: #{hgrn_bit_block.4} parent=1 // pred_check
      _
    $region51: #{hgrn_bit_block.4} parent=1 // pred_check_branch
      %396 = sbr.rel (0) target = $region53
    $region52: #{hgrn_bit_block.4} parent=1 // pred_region
      _
    $region53: #{hgrn_bit_block.4} parent=1 // pred_fallthru
      _
    // Predicated region
    $region54: #{hgrn_bit_block.4} parent=1 // pred_check
      _
    $region55: #{hgrn_bit_block.4} parent=1 // pred_check_branch
      %398 = sbr.rel (0) target = $region57
    $region56: #{hgrn_bit_block.4} parent=1 // pred_region
      _
    $region57: #{hgrn_bit_block.4} parent=1 // pred_fallthru
      _
    // Predicated region
    $region58: #{hgrn_bit_block.4} parent=1 // pred_check
      _
    $region59: #{hgrn_bit_block.4} parent=1 // pred_check_branch
      %400 = sbr.rel (0) target = $region61
    $region60: #{hgrn_bit_block.4} parent=1 // pred_region
      _
    $region61: #{hgrn_bit_block.4} parent=1 // pred_fallthru
      _
    // Predicated region
    $region62: #{hgrn_bit_block.4} parent=1 // pred_check
      _
    $region63: #{hgrn_bit_block.4} parent=1 // pred_check_branch
      %402 = sbr.rel (0) target = $region65
    $region64: #{hgrn_bit_block.4} parent=1 // pred_region
      _
    $region65: #{hgrn_bit_block.4} parent=1 // pred_fallthru
      _
    %403 = vsyncpa [#allocation3], 1

// kernel: hgrn_bit_block.7
$region0: #{hgrn_bit_block.7}
  #allocation0 [shape = 'u32[]', space=smem, size = 0x4, offset = 0x4, fixed_abs, tag = 'smem constant byte address 0x4 - core index']
  #allocation1 [shape = 'u32[144,128]{1,0:T(1,128)}', space=vmem, size = 0x12000, scoped, tag = 'internal scratch']
  %s0 = inlined_call_operand.vmem [shape: f32[16,32], index: 0, kind: input, shape index: {}]
  %s1 = inlined_call_operand.vmem [shape: f32[16,32], index: 1, kind: input, shape index: {}]
  %s2 = inlined_call_operand.vmem [shape: f32[1,32], index: 2, kind: input, shape index: {}]
  %s3 = inlined_call_operand.vmem [shape: s8[32,512], index: 3, kind: input, shape index: {}]
  %s4 = inlined_call_operand.vmem [shape: f32[1,256], index: 4, kind: input, shape index: {}]
  %s5 = inlined_call_operand.vmem [shape: s8[256,32], index: 5, kind: input, shape index: {}]
  %s6 = inlined_call_operand.vmem [shape: f32[1,2], index: 6, kind: input, shape index: {}]
  %s7 = inlined_call_operand.hbm [shape: f32[16,32], index: 7, kind: output, shape index: {}]
  %s8 = sld [smem:[#allocation0]]
  $region42: #{hgrn_bit_block.7} parent=0
    _
  %s10 = ssub.s32 1, %s8
  %s11 = scalar_select 0, %s10, %s8
  $region1: #{hgrn_bit_block.7} parent=0
    #allocation2 [shape = 'u8[512]{0}', space=smem, size = 0x200, scoped, tag = 'input window, operand 6, single buffered']
    #allocation3 [shape = 's32[1]{0}', space=sflag, size = 0x4, scoped, tag = 'scoped memory for hgrn_bit_block.7']
    #allocation4 [shape = 's32[1]{0}', space=sflag, size = 0x4, scoped, tag = 'scoped memory for hgrn_bit_block.7']
    #allocation5 [shape = 'u8[8192]{0}', space=vmem, size = 0x2000, scoped, tag = 'output window, operand 0, single buffered']
    %12 = vsyncpa [#allocation4], 0
    %13 = vsyncpa [#allocation3], 0
    // Predicated region
    $region2: #{hgrn_bit_block.7} parent=1 // pred_check
      _
    $region3: #{hgrn_bit_block.7} parent=1 // pred_check_branch
      %15 = sbr.rel (0) target = $region5
    $region4: #{hgrn_bit_block.7} parent=1 // pred_region
      _
    $region5: #{hgrn_bit_block.7} parent=1 // pred_fallthru
      _
    // Predicated region
    $region6: #{hgrn_bit_block.7} parent=1 // pred_check
      _
    $region7: #{hgrn_bit_block.7} parent=1 // pred_check_branch
      %17 = sbr.rel (0) target = $region9
    $region8: #{hgrn_bit_block.7} parent=1 // pred_region
      _
    $region9: #{hgrn_bit_block.7} parent=1 // pred_fallthru
      _
    // Predicated region
    $region10: #{hgrn_bit_block.7} parent=1 // pred_check
      _
    $region11: #{hgrn_bit_block.7} parent=1 // pred_check_branch
      %19 = sbr.rel (0) target = $region13
    $region12: #{hgrn_bit_block.7} parent=1 // pred_region
      _
    $region13: #{hgrn_bit_block.7} parent=1 // pred_fallthru
      _
    // Predicated region
    $region14: #{hgrn_bit_block.7} parent=1 // pred_check
      _
    $region15: #{hgrn_bit_block.7} parent=1 // pred_check_branch
      %21 = sbr.rel (0) target = $region17
    $region16: #{hgrn_bit_block.7} parent=1 // pred_region
      _
    $region17: #{hgrn_bit_block.7} parent=1 // pred_fallthru
      _
    // Predicated region
    $region18: #{hgrn_bit_block.7} parent=1 // pred_check
      _
    $region19: #{hgrn_bit_block.7} parent=1 // pred_check_branch
      %23 = sbr.rel (0) target = $region21
    $region20: #{hgrn_bit_block.7} parent=1 // pred_region
      _
    $region21: #{hgrn_bit_block.7} parent=1 // pred_fallthru
      _
    // Predicated region
    $region22: #{hgrn_bit_block.7} parent=1 // pred_check
      _
    $region23: #{hgrn_bit_block.7} parent=1 // pred_check_branch
      %25 = sbr.rel (0) target = $region25
    $region24: #{hgrn_bit_block.7} parent=1 // pred_region
      _
    $region25: #{hgrn_bit_block.7} parent=1 // pred_fallthru
      _
    // Predicated region
    $region26: #{hgrn_bit_block.7} parent=1 // pred_check
      _
    $region27: #{hgrn_bit_block.7} parent=1 // pred_check_branch
      %27 = sbr.rel (0) target = $region29
    $region28: #{hgrn_bit_block.7} parent=1 // pred_region
      %s29 = ssub.s32 16, 16
      %30 = vsyncadd [#allocation4], %s29
      %s32 = sshll.u32 %s6, 4
      %s33 = int_to_ptr.vmem [resolvable:$true] %s32
      %35 = dma.vmem_to_smem %s33, 16, [#allocation2], [#allocation4]
    $region29: #{hgrn_bit_block.7} parent=1 // pred_fallthru
      _
    // Predicated region
    $region30: #{hgrn_bit_block.7} parent=1 // pred_check
      _
    $region31: #{hgrn_bit_block.7} parent=1 // pred_check_branch
      %37 = sbr.rel (0) target = $region33
    $region32: #{hgrn_bit_block.7} parent=1 // pred_region
      %38 = dma.done [#allocation4], 16
    $region33: #{hgrn_bit_block.7} parent=1 // pred_fallthru
      _
    %39 = sfence
    %v41 = vld [vmem:[%s0] sm:$0xff]
    %v42 = vld [vmem:[%s0 + $0x8] sm:$0xff]
    %v43 = vmul.f32 %v41, %v41
    %v44 = vmul.f32 %v42, %v42
    %vm45 = vcmask 261120
    %v46 = vsel %vm45, %v43, 0.0
    %47 = vadd.xlane.f32.xlu0 %v46
    %v48 = vpop.xlane.xlu0 %47
    %v49 = vsel %vm45, %v44, 0.0
    %50 = vadd.xlane.f32.xlu0 %v49
    %v51 = vpop.xlane.xlu0 %50
    %v52 = vrcp.pop 32.0
    %v53 = vmul.f32 %v48, %v52
    %v54 = vmul.f32 %v51, %v52
    %v55 = vadd.f32 %v53, 1e-08
    %v56 = vadd.f32 %v54, 1e-08
    %v57 = vrsqrt.pop %v55
    %v58 = vrsqrt.pop %v56
    %v59 = vmul.f32 %v41, %v57
    %v60 = vmul.f32 %v42, %v58
    %v61 = vld [vmem:[%s2] sm:$0x1]
    %v63 = vlaneseq
    %v64 = vshrl.u32 %v63, 7
    %v65 = vsub.s32 0, %v64
    %v66 = vrot.slane %v61, %v65
    %v68 = vmul.f32 %v59, %v66
    %v69 = vmul.f32 %v60, %v66
    %v70 = vand.u32 2147483647, %v68
    %v71 = vand.u32 2147483647, %v69
    %v72 = vsel %vm45, %v70, -inf
    %73 = vmax.xlane.f32.xlu0 %v72
    %v74 = vpop.xlane.xlu0 %73
    %v75 = vsel %vm45, %v71, -inf
    %76 = vmax.xlane.f32.xlu0 %v75
    %v77 = vpop.xlane.xlu0 %76
    %v78 = vmax.f32 %v74, 1e-05
    %v79 = vmax.f32 %v77, 1e-05
    %v80 = vrcp.pop %v78
    %v81 = vmul.f32 127.0, %v80
    %v82 = vrcp.pop %v79
    %v83 = vmul.f32 127.0, %v82
    %v84 = vmul.f32 %v68, %v81
    %v85 = vmul.f32 %v69, %v83
    %v86 = vround.ne.pseudo %v84
    %v87 = vround.ne.pseudo %v85
    %v88 = vmax.f32 %v86, -128.0
    %v89 = vmax.f32 %v87, -128.0
    %v90 = vmin.f32 %v88, 127.0
    %v91 = vmin.f32 %v89, 127.0
    %v92 = vpack.c.bf16 %v91, %v90
    %v93 = vmul.f32 %v78, 0.007874016
    %v94 = vmul.f32 %v79, 0.007874016
    %v95 = vld [vmem:[%s3] sm:$0xff]
    %v96 = vld [vmem:[%s3 + $0x8] sm:$0xff]
    %v97 = vld [vmem:[%s3 + $0x10] sm:$0xff]
    %v98 = vld [vmem:[%s3 + $0x18] sm:$0xff]
    %v99 = vunpack.c.l.s8.bf16 %v95
    %v100 = vunpack.c.l.s8.bf16 %v96
    %v101 = vunpack.c.l.s8.bf16 %v97
    %v102 = vunpack.c.l.s8.bf16 %v98
    %v103 = vunpack.c.h.s8.bf16 %v95
    %v104 = vunpack.c.h.s8.bf16 %v96
    %v105 = vunpack.c.h.s8.bf16 %v97
    %v106 = vunpack.c.h.s8.bf16 %v98
    %v108 = vsel %vm45, %v92, 0
    %110 = vmatprep.subr.bf16.mxu0 %v100
    %111 = vmatpush1.bf16.msra.mxu0 %v99
    %112 = vmatprep.subr.bf16.mxu0 %v104
    %113 = vmatpush1.bf16.msra.mxu0 %v103
    %114 = vmatprep.subr.bf16.mxu0 0
    %115 = vmatpush1.bf16.msra.mxu0 0
    %116 = vmatprep.subr.bf16.mxu0 0
    %117 = vmatpush1.bf16.msra.mxu0 0
    %118 = vmatprep.subr.bf16.mxu0 0
    %119 = vmatpush1.bf16.msra.mxu0 0
    %120 = vmatprep.subr.bf16.mxu0 0
    %121 = vmatpush1.bf16.msra.mxu0 0
    %122 = vmatprep.subr.bf16.mxu0 0
    %123 = vmatpush1.bf16.msra.mxu0 0
    %124 = vmatprep.subr.bf16.mxu0 0
    %125 = vmatpush1.bf16.msra.mxu0 0
    %126 = vmatprep.subr.bf16.mxu0 0
    %127 = vmatpush1.bf16.msra.mxu0 0
    %128 = vmatprep.subr.bf16.mxu0 0
    %129 = vmatpush1.bf16.msra.mxu0 0
    %130 = vmatprep.subr.bf16.mxu0 0
    %131 = vmatpush1.bf16.msra.mxu0 0
    %132 = vmatprep.subr.bf16.mxu0 0
    %133 = vmatpush1.bf16.msra.mxu0 0
    %134 = vmatprep.subr.bf16.mxu0 0
    %135 = vmatpush1.bf16.msra.mxu0 0
    %136 = vmatprep.subr.bf16.mxu0 0
    %137 = vmatpush1.bf16.msra.mxu0 0
    %138 = vmatprep.subr.bf16.mxu0 0
    %139 = vmatpush1.bf16.msra.mxu0 0
    %140 = vmatprep.subr.bf16.mxu0 0
    %141 = vmatpush1.bf16.msra.mxu0 0
    %142 = vmatprep.mubr.bf16.mxu0 0
    %143 = vmatmul.mubr.bf16.gmra.mrb[0].mxu0 %v108
    %v144 = vpop.f32.mrb[0].mxu0
    %v145 = vadd.f32 0.0, %v144
    %v146 = vpop.f32.mrb[0].mxu0
    %v147 = vadd.f32 0.0, %v146
    %v148 = vpop.f32.mrb[0].mxu0
    %v149 = vadd.f32 0.0, %v148
    %v150 = vpop.f32.mrb[0].mxu0
    %v151 = vadd.f32 0.0, %v150
    %152 = vdwg.mxu0
    %153 = vmatprep.subr.bf16.mxu0 %v102
    %154 = vmatpush1.bf16.msra.mxu0 %v101
    %155 = vmatprep.subr.bf16.mxu0 %v106
    %156 = vmatpush1.bf16.msra.mxu0 %v105
    %157 = vmatprep.subr.bf16.mxu0 0
    %158 = vmatpush1.bf16.msra.mxu0 0
    %159 = vmatprep.subr.bf16.mxu0 0
    %160 = vmatpush1.bf16.msra.mxu0 0
    %161 = vmatprep.subr.bf16.mxu0 0
    %162 = vmatpush1.bf16.msra.mxu0 0
    %163 = vmatprep.subr.bf16.mxu0 0
    %164 = vmatpush1.bf16.msra.mxu0 0
    %165 = vmatprep.subr.bf16.mxu0 0
    %166 = vmatpush1.bf16.msra.mxu0 0
    %167 = vmatprep.subr.bf16.mxu0 0
    %168 = vmatpush1.bf16.msra.mxu0 0
    %169 = vmatprep.subr.bf16.mxu0 0
    %170 = vmatpush1.bf16.msra.mxu0 0
    %171 = vmatprep.subr.bf16.mxu0 0
    %172 = vmatpush1.bf16.msra.mxu0 0
    %173 = vmatprep.subr.bf16.mxu0 0
    %174 = vmatpush1.bf16.msra.mxu0 0
    %175 = vmatprep.subr.bf16.mxu0 0
    %176 = vmatpush1.bf16.msra.mxu0 0
    %177 = vmatprep.subr.bf16.mxu0 0
    %178 = vmatpush1.bf16.msra.mxu0 0
    %179 = vmatprep.subr.bf16.mxu0 0
    %180 = vmatpush1.bf16.msra.mxu0 0
    %181 = vmatprep.subr.bf16.mxu0 0
    %182 = vmatpush1.bf16.msra.mxu0 0
    %183 = vmatprep.subr.bf16.mxu0 0
    %184 = vmatpush1.bf16.msra.mxu0 0
    %185 = vmatprep.mubr.bf16.mxu0 0
    %186 = vmatmul.mubr.bf16.gmra.mrb[0].mxu0 %v108
    %v187 = vpop.f32.mrb[0].mxu0
    %v188 = vadd.f32 0.0, %v187
    %v189 = vpop.f32.mrb[0].mxu0
    %v190 = vadd.f32 0.0, %v189
    %v191 = vpop.f32.mrb[0].mxu0
    %v192 = vadd.f32 0.0, %v191
    %v193 = vpop.f32.mrb[0].mxu0
    %v194 = vadd.f32 0.0, %v193
    %195 = vdwg.mxu0
    %s196 = sld [smem:[#allocation2]]
    %v197 = vstv %s196
    %v198 = vmul.f32 %v93, %v197
    %v199 = vmul.f32 %v94, %v197
    %v200 = vmul.f32 %v145, %v198
    %v201 = vmul.f32 %v147, %v198
    %v202 = vmul.f32 %v188, %v198
    %v203 = vmul.f32 %v190, %v198
    %v204 = vmul.f32 %v149, %v199
    %v205 = vmul.f32 %v151, %v199
    %v206 = vmul.f32 %v192, %v199
    %v207 = vmul.f32 %v194, %v199
    %v208 = vxor.u32 %v200, 2147483648
    %v209 = vxor.u32 %v201, 2147483648
    %v210 = vxor.u32 %v204, 2147483648
    %v211 = vxor.u32 %v205, 2147483648
    %v212 = vmul.f32 %v208, 1.442695
    %v213 = vpow.pop %v212
    %v214 = vmul.f32 %v209, 1.442695
    %v215 = vpow.pop %v214
    %v216 = vmul.f32 %v210, 1.442695
    %v217 = vpow.pop %v216
    %v218 = vmul.f32 %v211, 1.442695
    %v219 = vpow.pop %v218
    %v220 = vadd.f32 %v213, 1.0
    %v221 = vadd.f32 %v215, 1.0
    %v222 = vadd.f32 %v217, 1.0
    %v223 = vadd.f32 %v219, 1.0
    %v224 = vrcp.pop %v220
    %v225 = vmul.f32 1.0, %v224
    %v226 = vrcp.pop %v221
    %v227 = vmul.f32 1.0, %v226
    %v228 = vrcp.pop %v222
    %v229 = vmul.f32 1.0, %v228
    %v230 = vrcp.pop %v223
    %v231 = vmul.f32 1.0, %v230
    %v232 = vmul.f32 %v200, %v225
    %v233 = vmul.f32 %v201, %v227
    %v234 = vmul.f32 %v204, %v229
    %v235 = vmul.f32 %v205, %v231
    %v236 = vmul.f32 %v232, %v202
    %v237 = vmul.f32 %v233, %v203
    %v238 = vmul.f32 %v234, %v206
    %v239 = vmul.f32 %v235, %v207
    %v240 = vmul.f32 %v236, %v236
    %v241 = vmul.f32 %v237, %v237
    %v242 = vmul.f32 %v238, %v238
    %v243 = vmul.f32 %v239, %v239
    %v244 = vadd.f32 %v240, %v241
    %245 = vadd.xlane.f32.xlu0 %v244
    %v246 = vpop.xlane.xlu0 %245
    %v247 = vadd.f32 %v242, %v243
    %248 = vadd.xlane.f32.xlu0 %v247
    %v249 = vpop.xlane.xlu0 %248
    %v250 = vrcp.pop 256.0
    %v251 = vmul.f32 %v246, %v250
    %v252 = vmul.f32 %v249, %v250
    %v253 = vadd.f32 %v251, 1e-08
    %v254 = vadd.f32 %v252, 1e-08
    %v255 = vrsqrt.pop %v253
    %v256 = vrsqrt.pop %v254
    %v257 = vmul.f32 %v236, %v255
    %v258 = vmul.f32 %v237, %v255
    %v259 = vmul.f32 %v238, %v256
    %v260 = vmul.f32 %v239, %v256
    %v261 = vld [vmem:[%s4] sm:$0x3]
    %v263 = vlaneseq
    %v264 = vshrl.u32 %v263, 7
    %v265 = vsub.s32 0, %v264
    %v266 = vrot.slane %v261, %v265
    %v267 = vlaneseq
    %v268 = vshrl.u32 %v267, 7
    %v269 = vsub.s32 1, %v268
    %v270 = vrot.slane %v261, %v269
    %v273 = vmul.f32 %v257, %v266
    %v274 = vmul.f32 %v258, %v270
    %v275 = vmul.f32 %v259, %v266
    %v276 = vmul.f32 %v260, %v270
    %v277 = vand.u32 2147483647, %v273
    %v278 = vand.u32 2147483647, %v274
    %v279 = vand.u32 2147483647, %v275
    %v280 = vand.u32 2147483647, %v276
    %v281 = vmax.f32 %v277, %v278
    %282 = vmax.xlane.f32.xlu0 %v281
    %v283 = vpop.xlane.xlu0 %282
    %v284 = vmax.f32 %v279, %v280
    %285 = vmax.xlane.f32.xlu0 %v284
    %v286 = vpop.xlane.xlu0 %285
    %v287 = vmax.f32 %v283, 1e-05
    %v288 = vmax.f32 %v286, 1e-05
    %v289 = vrcp.pop %v287
    %v290 = vmul.f32 127.0, %v289
    %v291 = vrcp.pop %v288
    %v292 = vmul.f32 127.0, %v291
    %v293 = vmul.f32 %v273, %v290
    %v294 = vmul.f32 %v274, %v290
    %v295 = vmul.f32 %v275, %v292
    %v296 = vmul.f32 %v276, %v292
    %v297 = vround.ne.pseudo %v293
    %v298 = vround.ne.pseudo %v294
    %v299 = vround.ne.pseudo %v295
    %v300 = vround.ne.pseudo %v296
    %v301 = vmax.f32 %v297, -128.0
    %v302 = vmax.f32 %v298, -128.0
    %v303 = vmax.f32 %v299, -128.0
    %v304 = vmax.f32 %v300, -128.0
    %v305 = vmin.f32 %v301, 127.0
    %v306 = vmin.f32 %v302, 127.0
    %v307 = vmin.f32 %v303, 127.0
    %v308 = vmin.f32 %v304, 127.0
    %v309 = vpack.c.bf16 %v307, %v305
    %v310 = vpack.c.bf16 %v308, %v306
    %v311 = vmul.f32 %v287, 0.007874016
    %v312 = vmul.f32 %v288, 0.007874016
    %v313 = vld [vmem:[%s5] sm:$0xff]
    %v314 = vld [vmem:[%s5 + $0x8] sm:$0xff]
    %v315 = vld [vmem:[%s5 + $0x10] sm:$0xff]
    %v316 = vld [vmem:[%s5 + $0x18] sm:$0xff]
    %v317 = vld [vmem:[%s5 + $0x20] sm:$0xff]
    %v318 = vld [vmem:[%s5 + $0x28] sm:$0xff]
    %v319 = vld [vmem:[%s5 + $0x30] sm:$0xff]
    %v320 = vld [vmem:[%s5 + $0x38] sm:$0xff]
    %v321 = vunpack.c.l.s8.bf16 %v313
    %v322 = vunpack.c.h.s8.bf16 %v313
    %v323 = vunpack.c.l.s8.bf16 %v314
    %v324 = vunpack.c.h.s8.bf16 %v314
    %v325 = vunpack.c.l.s8.bf16 %v315
    %v326 = vunpack.c.h.s8.bf16 %v315
    %v327 = vunpack.c.l.s8.bf16 %v316
    %v328 = vunpack.c.h.s8.bf16 %v316
    %v329 = vunpack.c.l.s8.bf16 %v317
    %v330 = vunpack.c.h.s8.bf16 %v317
    %v331 = vunpack.c.l.s8.bf16 %v318
    %v332 = vunpack.c.h.s8.bf16 %v318
    %v333 = vunpack.c.l.s8.bf16 %v319
    %v334 = vunpack.c.h.s8.bf16 %v319
    %v335 = vunpack.c.l.s8.bf16 %v320
    %v336 = vunpack.c.h.s8.bf16 %v320
    %337 = vmatprep.subr.bf16.mxu0 0
    %338 = vmatpush1.bf16.msra.mxu0 %v321
    %339 = vmatprep.subr.bf16.mxu0 0
    %340 = vmatpush1.bf16.msra.mxu0 %v322
    %341 = vmatprep.subr.bf16.mxu0 0
    %342 = vmatpush1.bf16.msra.mxu0 %v323
    %343 = vmatprep.subr.bf16.mxu0 0
    %344 = vmatpush1.bf16.msra.mxu0 %v324
    %345 = vmatprep.subr.bf16.mxu0 0
    %346 = vmatpush1.bf16.msra.mxu0 %v325
    %347 = vmatprep.subr.bf16.mxu0 0
    %348 = vmatpush1.bf16.msra.mxu0 %v326
    %349 = vmatprep.subr.bf16.mxu0 0
    %350 = vmatpush1.bf16.msra.mxu0 %v327
    %351 = vmatprep.subr.bf16.mxu0 0
    %352 = vmatpush1.bf16.msra.mxu0 %v328
    %353 = vmatprep.subr.bf16.mxu0 0
    %354 = vmatpush1.bf16.msra.mxu0 %v329
    %355 = vmatprep.subr.bf16.mxu0 0
    %356 = vmatpush1.bf16.msra.mxu0 %v330
    %357 = vmatprep.subr.bf16.mxu0 0
    %358 = vmatpush1.bf16.msra.mxu0 %v331
    %359 = vmatprep.subr.bf16.mxu0 0
    %360 = vmatpush1.bf16.msra.mxu0 %v332
    %361 = vmatprep.subr.bf16.mxu0 0
    %362 = vmatpush1.bf16.msra.mxu0 %v333
    %363 = vmatprep.subr.bf16.mxu0 0
    %364 = vmatpush1.bf16.msra.mxu0 %v334
    %365 = vmatprep.subr.bf16.mxu0 0
    %366 = vmatpush1.bf16.msra.mxu0 %v335
    %367 = vmatprep.subr.bf16.mxu0 0
    %368 = vmatpush1.bf16.msra.mxu0 %v336
    %369 = vmatprep.mubr.bf16.mxu0 %v310
    %370 = vmatmul.mubr.bf16.gmra.mrb[0].mxu0 %v309
    %v371 = vpop.f32.mrb[0].mxu0
    %v372 = vadd.f32 0.0, %v371
    %v373 = vpop.f32.mrb[0].mxu0
    %v374 = vpop.f32.mrb[0].mxu0
    %v375 = vadd.f32 0.0, %v374
    %v376 = vpop.f32.mrb[0].mxu0
    %377 = vdwg.mxu0
    %s378 = sld [smem:[#allocation2 + $0x1]]
    %v379 = vstv %s378
    %v380 = vmul.f32 %v311, %v379
    %v381 = vmul.f32 %v312, %v379
    %v382 = vmul.f32 %v372, %v380
    %v383 = vmul.f32 %v375, %v381
    %v384 = vld [vmem:[%s1] sm:$0xff]
    %v385 = vld [vmem:[%s1 + $0x8] sm:$0xff]
    %v386 = vadd.f32 %v384, %v382
    %v387 = vadd.f32 %v385, %v383
    %388 = vst.msk [vmem:[#allocation5] sm:$0xff] %vm45, %v386
    %389 = vst.msk [vmem:[#allocation5 + $0x8] sm:$0xff] %vm45, %v387
    // Predicated region
    $region34: #{hgrn_bit_block.7} parent=1 // pred_check
      _
    $region35: #{hgrn_bit_block.7} parent=1 // pred_check_branch
      %391 = sbr.rel (0) target = $region37
    $region36: #{hgrn_bit_block.7} parent=1 // pred_region
      %s393 = ssub.s32 256, 256
      %394 = vsyncadd [#allocation3], %s393
      %s395 = sshll.u32 [#allocation5], 4
      %s396 = int_to_ptr.vmem [resolvable:$true] %s395
      %401 = dma.vmem_to_hbm [thread:$0]  %s396, 256, %s7, [#allocation3], 128, 128, 8
    $region37: #{hgrn_bit_block.7} parent=1 // pred_fallthru
      _
    // Predicated region
    $region38: #{hgrn_bit_block.7} parent=1 // pred_check
      _
    $region39: #{hgrn_bit_block.7} parent=1 // pred_check_branch
      %403 = sbr.rel (0) target = $region41
    $region40: #{hgrn_bit_block.7} parent=1 // pred_region
      %404 = dma.done [#allocation3], 256
    $region41: #{hgrn_bit_block.7} parent=1 // pred_fallthru
      _
    %405 = vsyncpa [#allocation3], 1
    %406 = vsyncpa [#allocation4], 1

</llo_original>
